<compile_context>
chip_gen: v5e
topology: v5e:2x2
jax: 0.10.0
libtpu: 0.0.40
codegen_flags: <defaults>
</compile_context>

<pallas_src>
import functools

import jax
import jax.numpy as jnp
from jax import lax
from jax.experimental import pallas as pl
from jax.experimental.pallas import tpu as pltpu

INPUT_DIM = 8
EMBED_DIM = 16
HID_DIM = 32
SOURCE_SIZE = 8
OUTPUT_DIM = 4
TARGET_SIZE = 3
N_WINDOWS = 5      # past_window.shape[1]
WINDOW_LEN = 6     # per-window sequence length
EXT_DIM = 4        # past_ext.shape[2]  (== OUTPUT_DIM, required by output packing)
BATCH = 2


# ----------------------------------------------------------------------------
# Single fused kernel: one tall input-gate matmul, one merged 8-step GRU chain
# over a packed 16-row block, register-resident head (enc/attention/out/bias).
# ----------------------------------------------------------------------------
def _fused_kernel(xin_ref, ext_ref, w_ref, wout_ref, out_ref, *,
                  B, S, W, Lw, ROWS):
    f32 = jnp.float32
    H = HID_DIM
    G = 3 * H
    O = OUTPUT_DIM
    T = TARGET_SIZE
    BW = B * W
    OFF = S - Lw                       # window rows join the chain at step OFF

    # ---- static slices of the two packed weight slabs (2 inbound DMAs) ------
    Wcomb = w_ref[0:INPUT_DIM, :]                   # (In, 3H) = We @ Wih
    Whh = w_ref[8:8 + H, :]                         # (H, 3H)
    bcomb = w_ref[40:41, :]                         # (1, 3H)  = be @ Wih + bih
    bhh_b = jnp.broadcast_to(w_ref[48:49, :], (ROWS, G))   # hoisted broadcast
    Wenc = w_ref[56:56 + H, 0:H]                    # (H, H)
    Whb = w_ref[56:56 + H, H:H + 2 * O]             # (H, 2O) = Wenc @ [Whid|Wbias]
    benc = w_ref[88:89, 0:H]                        # (1, H)
    bhb = w_ref[88:89, H:H + 2 * O]                 # (1, 2O)
    bout = wout_ref[S * H:S * H + 1, :]             # (1, T*O)

    # ---- ALL GRU input gates in one tall off-chain matmul -------------------
    # (embedding pre-fused into Wcomb; per-step slices below are tile aligned)
    gi_all = jnp.dot(xin_ref[...], Wcomb, preferred_element_type=f32) + bcomb

    row_is_x = lax.broadcasted_iota(jnp.int32, (ROWS, 1), 0) < B

    # ---- single merged recurrence over the packed (x ++ windows ++ pad) rows
    # Only h @ Whh + gates sit on the serial chain (8 steps, fully unrolled).
    h = jnp.zeros((ROWS, H), f32)
    outv = jnp.zeros((ROWS, T * O), f32)
    for t in range(S):
        g = gi_all[t * ROWS:(t + 1) * ROWS, :]
        gh = jnp.dot(h, Whh, preferred_element_type=f32) + bhh_b
        r = jax.nn.sigmoid(g[:, 0:H] + gh[:, 0:H])
        z = jax.nn.sigmoid(g[:, H:2 * H] + gh[:, H:2 * H])
        n = jnp.tanh(g[:, 2 * H:3 * H] + r * gh[:, 2 * H:3 * H])
        h_new = (1.0 - z) * n + z * h
        if t < OFF:
            # Window rows have not started yet: keep them at h == 0 so the
            # 6-step window recurrence starting at step OFF is exact.
            h = jnp.where(row_is_x, h_new, 0.0)
        else:
            h = h_new
        # out_fc(flatten(x_latent)) folded into the loop as accumulating
        # partial matmuls against row slices of Wout (MRB-friendly on v7x);
        # only rows 0:B of outv are read at the end.
        outv = outv + jnp.dot(h, wout_ref[t * H:(t + 1) * H, :],
                              preferred_element_type=f32)

    # ---- head (all register resident; no VMEM scratch round-trips) ----------
    enc = jnp.dot(h, Wenc, preferred_element_type=f32) + benc        # (ROWS, H)
    # hidden_fc / bias_fc pre-fused with enc_fc (exact linear composition),
    # so hb does not serialize behind `enc`.
    hb = jnp.dot(h, Whb, preferred_element_type=f32) + bhb           # (ROWS, 2O)

    xh = enc[0:B, :]                                                 # (B, H)
    wh3 = enc[B:B + BW, :].reshape(B, W, H)                          # (B, W, H)
    wind3 = jax.nn.sigmoid(hb[B:B + BW, 0:O]).reshape(B, W, O)       # (B, W, O)
    bias = hb[0:B, O:2 * O]                                          # (B, O)

    # attention over windows: score and the past_ext expectation run on the
    # MXU as batched matmuls, softmax over W.
    scores = lax.dot_general(xh[:, None, :], wh3, (((2,), (2,)), ((0,), (0,))),
                             preferred_element_type=f32)             # (B, 1, W)
    alpha = jax.nn.softmax(scores, axis=-1)
    ind = lax.dot_general(alpha, ext_ref[...], (((2,), (1,)), ((0,), (0,))),
                          preferred_element_type=f32)                # (B, 1, E)

    out3 = (outv[0:B, :] + bout).reshape(B, T, O) + bias[:, None, :]

    # Single packed output buffer (one outbound DMA); wrapper splits it.
    out_ref[:, 0:T, :] = out3
    out_ref[:, T:T + 1, :] = ind
    out_ref[:, T + 1:T + 1 + W, :] = wind3


# ----------------------------------------------------------------------------
# One-time parameter packing (done once, outside the per-call path):
#   * algebraic fusions: Wcomb = We@Wih, bcomb = be@Wih + bih,
#     Whb = Wenc@[Whid|Wbias], bhb = benc@[Whid|Wbias] + [bhid|bbias]
#   * all small weights packed into one (96, 96) slab + Wout/bout slab
#     -> 2 parameter DMAs instead of 17.
# ----------------------------------------------------------------------------
def pack_params(p):
    f32 = jnp.float32
    H, G, O = HID_DIM, 3 * HID_DIM, OUTPUT_DIM

    Wcomb = (p["We"] @ p["Wih"]).astype(f32)                  # (In, 3H)
    bcomb = (p["be"] @ p["Wih"] + p["bih"]).astype(f32)       # (1, 3H)
    Whb_in = jnp.concatenate([p["Whid"], p["Wbias"]], axis=1)  # (H, 2O)
    bhb_in = jnp.concatenate([p["bhid"], p["bbias"]], axis=1)  # (1, 2O)
    Whb = (p["Wenc"] @ Whb_in).astype(f32)                     # (H, 2O)
    bhb = (p["benc"] @ Whb_in + bhb_in).astype(f32)            # (1, 2O)

    wslab = jnp.zeros((96, G), f32)
    wslab = wslab.at[0:INPUT_DIM, :].set(Wcomb)
    wslab = wslab.at[8:8 + H, :].set(p["Whh"])
    wslab = wslab.at[40:41, :].set(bcomb)
    wslab = wslab.at[48:49, :].set(p["bhh"])
    wslab = wslab.at[56:56 + H, 0:H].set(p["Wenc"])
    wslab = wslab.at[56:56 + H, H:H + 2 * O].set(Whb)
    wslab = wslab.at[88:89, 0:H].set(p["benc"])
    wslab = wslab.at[88:89, H:H + 2 * O].set(bhb)

    n_out_rows = SOURCE_SIZE * H
    wout_slab = jnp.zeros((n_out_rows + 8, TARGET_SIZE * O), f32)
    wout_slab = wout_slab.at[0:n_out_rows, :].set(p["Wout"])
    wout_slab = wout_slab.at[n_out_rows:n_out_rows + 1, :].set(p["bout"])

    return {"wslab": wslab, "wout": wout_slab}


@jax.jit
def fudan_forward(x, past_window, past_ext, packed):
    B, S, In = x.shape
    _, W, Lw, _ = past_window.shape
    BW = B * W
    ROWS = ((B + BW + 7) // 8) * 8          # packed, sublane-aligned row count
    assert EXT_DIM == OUTPUT_DIM            # required by the packed output

    f32 = jnp.float32
    # Time-major, sublane-padded packed input: rows = [x batch ; windows ; pad];
    # window rows are delayed by S - Lw steps (leading zeros) so one 8-step
    # chain covers both recurrences.  ~4 KiB one-time HBM-side relayout.
    x_tm = jnp.transpose(x, (1, 0, 2))                                  # (S, B, In)
    pw_tm = jnp.transpose(past_window.reshape(BW, Lw, In), (1, 0, 2))   # (Lw, BW, In)
    pw_tm = jnp.concatenate(
        [jnp.zeros((S - Lw, BW, In), f32), pw_tm], axis=0)              # (S, BW, In)
    pad = jnp.zeros((S, ROWS - B - BW, In), f32)
    xin = jnp.concatenate([x_tm, pw_tm, pad], axis=1).reshape(S * ROWS, In)

    kernel = functools.partial(_fused_kernel, B=B, S=S, W=W, Lw=Lw, ROWS=ROWS)
    vmem = pl.BlockSpec(memory_space=pltpu.MemorySpace.VMEM)
    # Grid-less on purpose: the whole working set is tens of KiB (<< VMEM on
    # v5e/v6e/v7x); 4 inbound DMAs, 1 outbound DMA, single TensorCore.
    packed_out = pl.pallas_call(
        kernel,
        out_shape=jax.ShapeDtypeStruct(
            (B, TARGET_SIZE + 1 + W, OUTPUT_DIM), jnp.float32),
        in_specs=[vmem, vmem, vmem, vmem],
        out_specs=vmem,
    )(xin, past_ext, packed["wslab"], packed["wout"])

    output = packed_out[:, 0:TARGET_SIZE, :]
    indicator = packed_out[:, TARGET_SIZE:TARGET_SIZE + 1, :]
    window_indicator = packed_out[:, TARGET_SIZE + 1:, :]
    return output, indicator, window_indicator


# ----------------------------------------------------------------------------
# Pure-JAX reference (mirrors the PyTorch forward) for correctness checking.
# ----------------------------------------------------------------------------
def _gru_ref(seq, p):
    e = seq @ p["We"] + p["be"][0]
    N = seq.shape[0]
    h0 = jnp.zeros((N, HID_DIM), jnp.float32)

    def step(h, et):
        gi = et @ p["Wih"] + p["bih"][0]
        gh = h @ p["Whh"] + p["bhh"][0]
        ir, iz, inn = jnp.split(gi, 3, axis=-1)
        hr, hz, hn = jnp.split(gh, 3, axis=-1)
        r = jax.nn.sigmoid(ir + hr)
        z = jax.nn.sigmoid(iz + hz)
        n = jnp.tanh(inn + r * hn)
        hnew = (1.0 - z) * n + z * h
        return hnew, hnew

    hlast, lat = lax.scan(step, h0, jnp.transpose(e, (1, 0, 2)))
    return jnp.transpose(lat, (1, 0, 2)), hlast


def fudan_reference(x, past_window, past_ext, p):
    B, S, _ = x.shape
    _, W, Lw, In = past_window.shape
    x_latent, x_h = _gru_ref(x, p)
    xh = x_h @ p["Wenc"] + p["benc"][0]
    _, w_h = _gru_ref(past_window.reshape(B * W, Lw, In), p)
    wh = (w_h @ p["Wenc"] + p["benc"][0]).reshape(B, W, HID_DIM)
    wind = jax.nn.sigmoid(wh @ p["Whid"] + p["bhid"][0])
    alpha = jax.nn.softmax(jnp.einsum("bwh,bh->bw", wh, xh), axis=1)
    ind = jnp.einsum("bw,bwe->be", alpha, past_ext)[:, None, :]
    out = x_latent.reshape(B, S * HID_DIM) @ p["Wout"] + p["bout"][0]
    out = out.reshape(B, TARGET_SIZE, OUTPUT_DIM)
    bias = xh @ p["Wbias"] + p["bbias"][0]
    return out + bias[:, None, :], ind, wind


# ----------------------------------------------------------------------------
# Deterministic parameter init + driver.
# ----------------------------------------------------------------------------
def init_params(key):
    def nrm(k, shape, scale=0.1):
        return (scale * jax.random.normal(k, shape)).astype(jnp.float32)

    ks = jax.random.split(key, 14)
    return {
        "We":    nrm(ks[0], (INPUT_DIM, EMBED_DIM)),
        "be":    nrm(ks[1], (1, EMBED_DIM)),
        "Wih":   nrm(ks[2], (EMBED_DIM, 3 * HID_DIM)),
        "bih":   nrm(ks[3], (1, 3 * HID_DIM)),
        "Whh":   nrm(ks[4], (HID_DIM, 3 * HID_DIM)),
        "bhh":   nrm(ks[5], (1, 3 * HID_DIM)),
        "Wenc":  nrm(ks[6], (HID_DIM, HID_DIM)),
        "benc":  nrm(ks[7], (1, HID_DIM)),
        "Whid":  nrm(ks[8], (HID_DIM, OUTPUT_DIM)),
        "bhid":  nrm(ks[9], (1, OUTPUT_DIM)),
        "Wout":  nrm(ks[10], (SOURCE_SIZE * HID_DIM, TARGET_SIZE * OUTPUT_DIM)),
        "bout":  nrm(ks[11], (1, TARGET_SIZE * OUTPUT_DIM)),
        "Wbias": nrm(ks[12], (HID_DIM, OUTPUT_DIM)),
        "bbias": nrm(ks[13], (1, OUTPUT_DIM)),
    }


if __name__ == "__main__":
    key = jax.random.PRNGKey(0)
    kp, kx, kw, ke = jax.random.split(key, 4)
    params = init_params(kp)
    packed = pack_params(params)     # one-time packing, off the per-call path

    x = jax.random.normal(kx, (BATCH, SOURCE_SIZE, INPUT_DIM), dtype=jnp.float32)
    past_window = jax.random.normal(
        kw, (BATCH, N_WINDOWS, WINDOW_LEN, INPUT_DIM), dtype=jnp.float32)
    past_ext = jax.random.normal(ke, (BATCH, N_WINDOWS, EXT_DIM), dtype=jnp.float32)

    output, indicator_output, window_indicator = fudan_forward(
        x, past_window, past_ext, packed)
    jax.block_until_ready((output, indicator_output, window_indicator))

    # TODO(synk): self.dropout is declared in __init__ but never applied in the
    # reference forward; intentionally omitted.
    ro, ri, rw = fudan_reference(x, past_window, past_ext, params)
    assert output.shape == (BATCH, TARGET_SIZE, OUTPUT_DIM)
    assert indicator_output.shape == (BATCH, 1, EXT_DIM)
    assert window_indicator.shape == (BATCH, N_WINDOWS, OUTPUT_DIM)
    assert jnp.allclose(output, ro, atol=1e-3, rtol=1e-3)
    assert jnp.allclose(indicator_output, ri, atol=1e-3, rtol=1e-3)
    assert jnp.allclose(window_indicator, rw, atol=1e-3, rtol=1e-3)

    print("KERNEL_OK")
</pallas_src>

<mosaic_0001>
module attributes {stable_mosaic.version = 11 : i64} {
  func.func @_fused_kernel(%arg0: memref<128x8xf32, #tpu.memory_space<vmem>>, %arg1: memref<2x5x4xf32, #tpu.memory_space<vmem>>, %arg2: memref<96x96xf32, #tpu.memory_space<vmem>>, %arg3: memref<264x12xf32, #tpu.memory_space<vmem>>, %arg4: memref<2x9x4xf32, #tpu.memory_space<vmem>>) attributes {dimension_semantics = [], scalar_prefetch = 0 : i64, scratch_operands = 0 : i64, tpu.core_type = #tpu.core_type<tc>} {
    %c0 = arith.constant 0 : index
    %c0_0 = arith.constant 0 : index
    %0 = vector.load %arg2[%c0, %c0_0] : memref<96x96xf32, #tpu.memory_space<vmem>>, vector<8x96xf32>
    %c8 = arith.constant 8 : index
    %c0_1 = arith.constant 0 : index
    %1 = vector.load %arg2[%c8, %c0_1] : memref<96x96xf32, #tpu.memory_space<vmem>>, vector<32x96xf32>
    %c40 = arith.constant 40 : index
    %c0_2 = arith.constant 0 : index
    %2 = vector.load %arg2[%c40, %c0_2] : memref<96x96xf32, #tpu.memory_space<vmem>>, vector<1x96xf32>
    %c48 = arith.constant 48 : index
    %c0_3 = arith.constant 0 : index
    %3 = vector.load %arg2[%c48, %c0_3] : memref<96x96xf32, #tpu.memory_space<vmem>>, vector<1x96xf32>
    %4 = vector.shape_cast %3 : vector<1x96xf32> to vector<1x96xf32>
    %5 = vector.broadcast %4 : vector<1x96xf32> to vector<16x96xf32>
    %c56 = arith.constant 56 : index
    %c0_4 = arith.constant 0 : index
    %6 = vector.load %arg2[%c56, %c0_4] : memref<96x96xf32, #tpu.memory_space<vmem>>, vector<32x32xf32>
    %c56_5 = arith.constant 56 : index
    %c32 = arith.constant 32 : index
    %7 = vector.load %arg2[%c56_5, %c32] : memref<96x96xf32, #tpu.memory_space<vmem>>, vector<32x8xf32>
    %c88 = arith.constant 88 : index
    %c0_6 = arith.constant 0 : index
    %8 = vector.load %arg2[%c88, %c0_6] : memref<96x96xf32, #tpu.memory_space<vmem>>, vector<1x32xf32>
    %c88_7 = arith.constant 88 : index
    %c32_8 = arith.constant 32 : index
    %9 = vector.load %arg2[%c88_7, %c32_8] : memref<96x96xf32, #tpu.memory_space<vmem>>, vector<1x8xf32>
    %c256 = arith.constant 256 : index
    %c0_9 = arith.constant 0 : index
    %10 = vector.load %arg3[%c256, %c0_9] : memref<264x12xf32, #tpu.memory_space<vmem>>, vector<1x12xf32>
    %c0_10 = arith.constant 0 : index
    %c0_11 = arith.constant 0 : index
    %11 = vector.load %arg0[%c0_10, %c0_11] : memref<128x8xf32, #tpu.memory_space<vmem>>, vector<128x8xf32>
    %cst = arith.constant dense<0.000000e+00> : vector<128x96xf32>
    %12 = tpu.matmul %11, %0, %cst {dimension_numbers = #tpu.dot_dimension_numbers<[1], [0], [0], [1], [0, 0, 1, 1], [], []>} : vector<128x8xf32>, vector<8x96xf32>, vector<128x96xf32> -> vector<128x96xf32>
    %13 = vector.broadcast %2 : vector<1x96xf32> to vector<128x96xf32>
    %14 = arith.addf %12, %13 : vector<128x96xf32>
    %15 = tpu.iota {dimensions = array<i32: 0>} : vector<16x1xi32>
    %c2_i32 = arith.constant 2 : i32
    %16 = vector.broadcast %c2_i32 : i32 to vector<16x1xi32>
    %17 = arith.cmpi slt, %15, %16 : vector<16x1xi32>
    %cst_12 = arith.constant 0.000000e+00 : f32
    %18 = vector.broadcast %cst_12 : f32 to vector<16x32xf32>
    %cst_13 = arith.constant 0.000000e+00 : f32
    %19 = vector.broadcast %cst_13 : f32 to vector<16x12xf32>
    %20 = vector.extract_strided_slice %14 {offsets = [0, 0], sizes = [16, 96], strides = [1, 1]} : vector<128x96xf32> to vector<16x96xf32>
    %cst_14 = arith.constant dense<0.000000e+00> : vector<16x96xf32>
    %21 = tpu.matmul %18, %1, %cst_14 {dimension_numbers = #tpu.dot_dimension_numbers<[1], [0], [0], [1], [0, 0, 1, 1], [], []>} : vector<16x32xf32>, vector<32x96xf32>, vector<16x96xf32> -> vector<16x96xf32>
    %22 = arith.addf %21, %5 : vector<16x96xf32>
    %23 = vector.extract_strided_slice %20 {offsets = [0, 0], sizes = [16, 32], strides = [1, 1]} : vector<16x96xf32> to vector<16x32xf32>
    %24 = vector.extract_strided_slice %22 {offsets = [0, 0], sizes = [16, 32], strides = [1, 1]} : vector<16x96xf32> to vector<16x32xf32>
    %25 = arith.addf %23, %24 : vector<16x32xf32>
    %26 = arith.negf %25 : vector<16x32xf32>
    %27 = math.exp %26 : vector<16x32xf32>
    %cst_15 = arith.constant 1.000000e+00 : f32
    %28 = vector.broadcast %cst_15 : f32 to vector<16x32xf32>
    %29 = arith.addf %28, %27 : vector<16x32xf32>
    %30 = arith.divf %28, %29 : vector<16x32xf32>
    %31 = vector.extract_strided_slice %20 {offsets = [0, 32], sizes = [16, 32], strides = [1, 1]} : vector<16x96xf32> to vector<16x32xf32>
    %32 = vector.extract_strided_slice %22 {offsets = [0, 32], sizes = [16, 32], strides = [1, 1]} : vector<16x96xf32> to vector<16x32xf32>
    %33 = arith.addf %31, %32 : vector<16x32xf32>
    %34 = arith.negf %33 : vector<16x32xf32>
    %35 = math.exp %34 : vector<16x32xf32>
    %cst_16 = arith.constant 1.000000e+00 : f32
    %36 = vector.broadcast %cst_16 : f32 to vector<16x32xf32>
    %37 = arith.addf %36, %35 : vector<16x32xf32>
    %38 = arith.divf %36, %37 : vector<16x32xf32>
    %39 = vector.extract_strided_slice %20 {offsets = [0, 64], sizes = [16, 32], strides = [1, 1]} : vector<16x96xf32> to vector<16x32xf32>
    %40 = vector.extract_strided_slice %22 {offsets = [0, 64], sizes = [16, 32], strides = [1, 1]} : vector<16x96xf32> to vector<16x32xf32>
    %41 = arith.mulf %30, %40 : vector<16x32xf32>
    %42 = arith.addf %39, %41 : vector<16x32xf32>
    %43 = math.tanh %42 : vector<16x32xf32>
    %cst_17 = arith.constant 1.000000e+00 : f32
    %44 = vector.broadcast %cst_17 : f32 to vector<16x32xf32>
    %45 = arith.subf %44, %38 : vector<16x32xf32>
    %46 = arith.mulf %45, %43 : vector<16x32xf32>
    %47 = arith.mulf %38, %18 : vector<16x32xf32>
    %48 = arith.addf %46, %47 : vector<16x32xf32>
    %cst_18 = arith.constant 0.000000e+00 : f32
    %49 = vector.shape_cast %17 : vector<16x1xi1> to vector<16x1xi1>
    %50 = vector.broadcast %49 : vector<16x1xi1> to vector<16x32xi1>
    %51 = vector.broadcast %cst_18 : f32 to vector<16x32xf32>
    %52 = arith.select %50, %48, %51 : vector<16x32xi1>, vector<16x32xf32>
    %c0_19 = arith.constant 0 : index
    %c0_20 = arith.constant 0 : index
    %53 = vector.load %arg3[%c0_19, %c0_20] : memref<264x12xf32, #tpu.memory_space<vmem>>, vector<32x12xf32>
    %cst_21 = arith.constant dense<0.000000e+00> : vector<16x12xf32>
    %54 = tpu.matmul %52, %53, %cst_21 {dimension_numbers = #tpu.dot_dimension_numbers<[1], [0], [0], [1], [0, 0, 1, 1], [], []>} : vector<16x32xf32>, vector<32x12xf32>, vector<16x12xf32> -> vector<16x12xf32>
    %55 = arith.addf %19, %54 : vector<16x12xf32>
    %56 = vector.extract_strided_slice %14 {offsets = [16, 0], sizes = [16, 96], strides = [1, 1]} : vector<128x96xf32> to vector<16x96xf32>
    %cst_22 = arith.constant dense<0.000000e+00> : vector<16x96xf32>
    %57 = tpu.matmul %52, %1, %cst_22 {dimension_numbers = #tpu.dot_dimension_numbers<[1], [0], [0], [1], [0, 0, 1, 1], [], []>} : vector<16x32xf32>, vector<32x96xf32>, vector<16x96xf32> -> vector<16x96xf32>
    %58 = arith.addf %57, %5 : vector<16x96xf32>
    %59 = vector.extract_strided_slice %56 {offsets = [0, 0], sizes = [16, 32], strides = [1, 1]} : vector<16x96xf32> to vector<16x32xf32>
    %60 = vector.extract_strided_slice %58 {offsets = [0, 0], sizes = [16, 32], strides = [1, 1]} : vector<16x96xf32> to vector<16x32xf32>
    %61 = arith.addf %59, %60 : vector<16x32xf32>
    %62 = arith.negf %61 : vector<16x32xf32>
    %63 = math.exp %62 : vector<16x32xf32>
    %cst_23 = arith.constant 1.000000e+00 : f32
    %64 = vector.broadcast %cst_23 : f32 to vector<16x32xf32>
    %65 = arith.addf %64, %63 : vector<16x32xf32>
    %66 = arith.divf %64, %65 : vector<16x32xf32>
    %67 = vector.extract_strided_slice %56 {offsets = [0, 32], sizes = [16, 32], strides = [1, 1]} : vector<16x96xf32> to vector<16x32xf32>
    %68 = vector.extract_strided_slice %58 {offsets = [0, 32], sizes = [16, 32], strides = [1, 1]} : vector<16x96xf32> to vector<16x32xf32>
    %69 = arith.addf %67, %68 : vector<16x32xf32>
    %70 = arith.negf %69 : vector<16x32xf32>
    %71 = math.exp %70 : vector<16x32xf32>
    %cst_24 = arith.constant 1.000000e+00 : f32
    %72 = vector.broadcast %cst_24 : f32 to vector<16x32xf32>
    %73 = arith.addf %72, %71 : vector<16x32xf32>
    %74 = arith.divf %72, %73 : vector<16x32xf32>
    %75 = vector.extract_strided_slice %56 {offsets = [0, 64], sizes = [16, 32], strides = [1, 1]} : vector<16x96xf32> to vector<16x32xf32>
    %76 = vector.extract_strided_slice %58 {offsets = [0, 64], sizes = [16, 32], strides = [1, 1]} : vector<16x96xf32> to vector<16x32xf32>
    %77 = arith.mulf %66, %76 : vector<16x32xf32>
    %78 = arith.addf %75, %77 : vector<16x32xf32>
    %79 = math.tanh %78 : vector<16x32xf32>
    %cst_25 = arith.constant 1.000000e+00 : f32
    %80 = vector.broadcast %cst_25 : f32 to vector<16x32xf32>
    %81 = arith.subf %80, %74 : vector<16x32xf32>
    %82 = arith.mulf %81, %79 : vector<16x32xf32>
    %83 = arith.mulf %74, %52 : vector<16x32xf32>
    %84 = arith.addf %82, %83 : vector<16x32xf32>
    %cst_26 = arith.constant 0.000000e+00 : f32
    %85 = vector.shape_cast %17 : vector<16x1xi1> to vector<16x1xi1>
    %86 = vector.broadcast %85 : vector<16x1xi1> to vector<16x32xi1>
    %87 = vector.broadcast %cst_26 : f32 to vector<16x32xf32>
    %88 = arith.select %86, %84, %87 : vector<16x32xi1>, vector<16x32xf32>
    %c32_27 = arith.constant 32 : index
    %c0_28 = arith.constant 0 : index
    %89 = vector.load %arg3[%c32_27, %c0_28] : memref<264x12xf32, #tpu.memory_space<vmem>>, vector<32x12xf32>
    %cst_29 = arith.constant dense<0.000000e+00> : vector<16x12xf32>
    %90 = tpu.matmul %88, %89, %cst_29 {dimension_numbers = #tpu.dot_dimension_numbers<[1], [0], [0], [1], [0, 0, 1, 1], [], []>} : vector<16x32xf32>, vector<32x12xf32>, vector<16x12xf32> -> vector<16x12xf32>
    %91 = arith.addf %55, %90 : vector<16x12xf32>
    %92 = vector.extract_strided_slice %14 {offsets = [32, 0], sizes = [16, 96], strides = [1, 1]} : vector<128x96xf32> to vector<16x96xf32>
    %cst_30 = arith.constant dense<0.000000e+00> : vector<16x96xf32>
    %93 = tpu.matmul %88, %1, %cst_30 {dimension_numbers = #tpu.dot_dimension_numbers<[1], [0], [0], [1], [0, 0, 1, 1], [], []>} : vector<16x32xf32>, vector<32x96xf32>, vector<16x96xf32> -> vector<16x96xf32>
    %94 = arith.addf %93, %5 : vector<16x96xf32>
    %95 = vector.extract_strided_slice %92 {offsets = [0, 0], sizes = [16, 32], strides = [1, 1]} : vector<16x96xf32> to vector<16x32xf32>
    %96 = vector.extract_strided_slice %94 {offsets = [0, 0], sizes = [16, 32], strides = [1, 1]} : vector<16x96xf32> to vector<16x32xf32>
    %97 = arith.addf %95, %96 : vector<16x32xf32>
    %98 = arith.negf %97 : vector<16x32xf32>
    %99 = math.exp %98 : vector<16x32xf32>
    %cst_31 = arith.constant 1.000000e+00 : f32
    %100 = vector.broadcast %cst_31 : f32 to vector<16x32xf32>
    %101 = arith.addf %100, %99 : vector<16x32xf32>
    %102 = arith.divf %100, %101 : vector<16x32xf32>
    %103 = vector.extract_strided_slice %92 {offsets = [0, 32], sizes = [16, 32], strides = [1, 1]} : vector<16x96xf32> to vector<16x32xf32>
    %104 = vector.extract_strided_slice %94 {offsets = [0, 32], sizes = [16, 32], strides = [1, 1]} : vector<16x96xf32> to vector<16x32xf32>
    %105 = arith.addf %103, %104 : vector<16x32xf32>
    %106 = arith.negf %105 : vector<16x32xf32>
    %107 = math.exp %106 : vector<16x32xf32>
    %cst_32 = arith.constant 1.000000e+00 : f32
    %108 = vector.broadcast %cst_32 : f32 to vector<16x32xf32>
    %109 = arith.addf %108, %107 : vector<16x32xf32>
    %110 = arith.divf %108, %109 : vector<16x32xf32>
    %111 = vector.extract_strided_slice %92 {offsets = [0, 64], sizes = [16, 32], strides = [1, 1]} : vector<16x96xf32> to vector<16x32xf32>
    %112 = vector.extract_strided_slice %94 {offsets = [0, 64], sizes = [16, 32], strides = [1, 1]} : vector<16x96xf32> to vector<16x32xf32>
    %113 = arith.mulf %102, %112 : vector<16x32xf32>
    %114 = arith.addf %111, %113 : vector<16x32xf32>
    %115 = math.tanh %114 : vector<16x32xf32>
    %cst_33 = arith.constant 1.000000e+00 : f32
    %116 = vector.broadcast %cst_33 : f32 to vector<16x32xf32>
    %117 = arith.subf %116, %110 : vector<16x32xf32>
    %118 = arith.mulf %117, %115 : vector<16x32xf32>
    %119 = arith.mulf %110, %88 : vector<16x32xf32>
    %120 = arith.addf %118, %119 : vector<16x32xf32>
    %c64 = arith.constant 64 : index
    %c0_34 = arith.constant 0 : index
    %121 = vector.load %arg3[%c64, %c0_34] : memref<264x12xf32, #tpu.memory_space<vmem>>, vector<32x12xf32>
    %cst_35 = arith.constant dense<0.000000e+00> : vector<16x12xf32>
    %122 = tpu.matmul %120, %121, %cst_35 {dimension_numbers = #tpu.dot_dimension_numbers<[1], [0], [0], [1], [0, 0, 1, 1], [], []>} : vector<16x32xf32>, vector<32x12xf32>, vector<16x12xf32> -> vector<16x12xf32>
    %123 = arith.addf %91, %122 : vector<16x12xf32>
    %124 = vector.extract_strided_slice %14 {offsets = [48, 0], sizes = [16, 96], strides = [1, 1]} : vector<128x96xf32> to vector<16x96xf32>
    %cst_36 = arith.constant dense<0.000000e+00> : vector<16x96xf32>
    %125 = tpu.matmul %120, %1, %cst_36 {dimension_numbers = #tpu.dot_dimension_numbers<[1], [0], [0], [1], [0, 0, 1, 1], [], []>} : vector<16x32xf32>, vector<32x96xf32>, vector<16x96xf32> -> vector<16x96xf32>
    %126 = arith.addf %125, %5 : vector<16x96xf32>
    %127 = vector.extract_strided_slice %124 {offsets = [0, 0], sizes = [16, 32], strides = [1, 1]} : vector<16x96xf32> to vector<16x32xf32>
    %128 = vector.extract_strided_slice %126 {offsets = [0, 0], sizes = [16, 32], strides = [1, 1]} : vector<16x96xf32> to vector<16x32xf32>
    %129 = arith.addf %127, %128 : vector<16x32xf32>
    %130 = arith.negf %129 : vector<16x32xf32>
    %131 = math.exp %130 : vector<16x32xf32>
    %cst_37 = arith.constant 1.000000e+00 : f32
    %132 = vector.broadcast %cst_37 : f32 to vector<16x32xf32>
    %133 = arith.addf %132, %131 : vector<16x32xf32>
    %134 = arith.divf %132, %133 : vector<16x32xf32>
    %135 = vector.extract_strided_slice %124 {offsets = [0, 32], sizes = [16, 32], strides = [1, 1]} : vector<16x96xf32> to vector<16x32xf32>
    %136 = vector.extract_strided_slice %126 {offsets = [0, 32], sizes = [16, 32], strides = [1, 1]} : vector<16x96xf32> to vector<16x32xf32>
    %137 = arith.addf %135, %136 : vector<16x32xf32>
    %138 = arith.negf %137 : vector<16x32xf32>
    %139 = math.exp %138 : vector<16x32xf32>
    %cst_38 = arith.constant 1.000000e+00 : f32
    %140 = vector.broadcast %cst_38 : f32 to vector<16x32xf32>
    %141 = arith.addf %140, %139 : vector<16x32xf32>
    %142 = arith.divf %140, %141 : vector<16x32xf32>
    %143 = vector.extract_strided_slice %124 {offsets = [0, 64], sizes = [16, 32], strides = [1, 1]} : vector<16x96xf32> to vector<16x32xf32>
    %144 = vector.extract_strided_slice %126 {offsets = [0, 64], sizes = [16, 32], strides = [1, 1]} : vector<16x96xf32> to vector<16x32xf32>
    %145 = arith.mulf %134, %144 : vector<16x32xf32>
    %146 = arith.addf %143, %145 : vector<16x32xf32>
    %147 = math.tanh %146 : vector<16x32xf32>
    %cst_39 = arith.constant 1.000000e+00 : f32
    %148 = vector.broadcast %cst_39 : f32 to vector<16x32xf32>
    %149 = arith.subf %148, %142 : vector<16x32xf32>
    %150 = arith.mulf %149, %147 : vector<16x32xf32>
    %151 = arith.mulf %142, %120 : vector<16x32xf32>
    %152 = arith.addf %150, %151 : vector<16x32xf32>
    %c96 = arith.constant 96 : index
    %c0_40 = arith.constant 0 : index
    %153 = vector.load %arg3[%c96, %c0_40] : memref<264x12xf32, #tpu.memory_space<vmem>>, vector<32x12xf32>
    %cst_41 = arith.constant dense<0.000000e+00> : vector<16x12xf32>
    %154 = tpu.matmul %152, %153, %cst_41 {dimension_numbers = #tpu.dot_dimension_numbers<[1], [0], [0], [1], [0, 0, 1, 1], [], []>} : vector<16x32xf32>, vector<32x12xf32>, vector<16x12xf32> -> vector<16x12xf32>
    %155 = arith.addf %123, %154 : vector<16x12xf32>
    %156 = vector.extract_strided_slice %14 {offsets = [64, 0], sizes = [16, 96], strides = [1, 1]} : vector<128x96xf32> to vector<16x96xf32>
    %cst_42 = arith.constant dense<0.000000e+00> : vector<16x96xf32>
    %157 = tpu.matmul %152, %1, %cst_42 {dimension_numbers = #tpu.dot_dimension_numbers<[1], [0], [0], [1], [0, 0, 1, 1], [], []>} : vector<16x32xf32>, vector<32x96xf32>, vector<16x96xf32> -> vector<16x96xf32>
    %158 = arith.addf %157, %5 : vector<16x96xf32>
    %159 = vector.extract_strided_slice %156 {offsets = [0, 0], sizes = [16, 32], strides = [1, 1]} : vector<16x96xf32> to vector<16x32xf32>
    %160 = vector.extract_strided_slice %158 {offsets = [0, 0], sizes = [16, 32], strides = [1, 1]} : vector<16x96xf32> to vector<16x32xf32>
    %161 = arith.addf %159, %160 : vector<16x32xf32>
    %162 = arith.negf %161 : vector<16x32xf32>
    %163 = math.exp %162 : vector<16x32xf32>
    %cst_43 = arith.constant 1.000000e+00 : f32
    %164 = vector.broadcast %cst_43 : f32 to vector<16x32xf32>
    %165 = arith.addf %164, %163 : vector<16x32xf32>
    %166 = arith.divf %164, %165 : vector<16x32xf32>
    %167 = vector.extract_strided_slice %156 {offsets = [0, 32], sizes = [16, 32], strides = [1, 1]} : vector<16x96xf32> to vector<16x32xf32>
    %168 = vector.extract_strided_slice %158 {offsets = [0, 32], sizes = [16, 32], strides = [1, 1]} : vector<16x96xf32> to vector<16x32xf32>
    %169 = arith.addf %167, %168 : vector<16x32xf32>
    %170 = arith.negf %169 : vector<16x32xf32>
    %171 = math.exp %170 : vector<16x32xf32>
    %cst_44 = arith.constant 1.000000e+00 : f32
    %172 = vector.broadcast %cst_44 : f32 to vector<16x32xf32>
    %173 = arith.addf %172, %171 : vector<16x32xf32>
    %174 = arith.divf %172, %173 : vector<16x32xf32>
    %175 = vector.extract_strided_slice %156 {offsets = [0, 64], sizes = [16, 32], strides = [1, 1]} : vector<16x96xf32> to vector<16x32xf32>
    %176 = vector.extract_strided_slice %158 {offsets = [0, 64], sizes = [16, 32], strides = [1, 1]} : vector<16x96xf32> to vector<16x32xf32>
    %177 = arith.mulf %166, %176 : vector<16x32xf32>
    %178 = arith.addf %175, %177 : vector<16x32xf32>
    %179 = math.tanh %178 : vector<16x32xf32>
    %cst_45 = arith.constant 1.000000e+00 : f32
    %180 = vector.broadcast %cst_45 : f32 to vector<16x32xf32>
    %181 = arith.subf %180, %174 : vector<16x32xf32>
    %182 = arith.mulf %181, %179 : vector<16x32xf32>
    %183 = arith.mulf %174, %152 : vector<16x32xf32>
    %184 = arith.addf %182, %183 : vector<16x32xf32>
    %c128 = arith.constant 128 : index
    %c0_46 = arith.constant 0 : index
    %185 = vector.load %arg3[%c128, %c0_46] : memref<264x12xf32, #tpu.memory_space<vmem>>, vector<32x12xf32>
    %cst_47 = arith.constant dense<0.000000e+00> : vector<16x12xf32>
    %186 = tpu.matmul %184, %185, %cst_47 {dimension_numbers = #tpu.dot_dimension_numbers<[1], [0], [0], [1], [0, 0, 1, 1], [], []>} : vector<16x32xf32>, vector<32x12xf32>, vector<16x12xf32> -> vector<16x12xf32>
    %187 = arith.addf %155, %186 : vector<16x12xf32>
    %188 = vector.extract_strided_slice %14 {offsets = [80, 0], sizes = [16, 96], strides = [1, 1]} : vector<128x96xf32> to vector<16x96xf32>
    %cst_48 = arith.constant dense<0.000000e+00> : vector<16x96xf32>
    %189 = tpu.matmul %184, %1, %cst_48 {dimension_numbers = #tpu.dot_dimension_numbers<[1], [0], [0], [1], [0, 0, 1, 1], [], []>} : vector<16x32xf32>, vector<32x96xf32>, vector<16x96xf32> -> vector<16x96xf32>
    %190 = arith.addf %189, %5 : vector<16x96xf32>
    %191 = vector.extract_strided_slice %188 {offsets = [0, 0], sizes = [16, 32], strides = [1, 1]} : vector<16x96xf32> to vector<16x32xf32>
    %192 = vector.extract_strided_slice %190 {offsets = [0, 0], sizes = [16, 32], strides = [1, 1]} : vector<16x96xf32> to vector<16x32xf32>
    %193 = arith.addf %191, %192 : vector<16x32xf32>
    %194 = arith.negf %193 : vector<16x32xf32>
    %195 = math.exp %194 : vector<16x32xf32>
    %cst_49 = arith.constant 1.000000e+00 : f32
    %196 = vector.broadcast %cst_49 : f32 to vector<16x32xf32>
    %197 = arith.addf %196, %195 : vector<16x32xf32>
    %198 = arith.divf %196, %197 : vector<16x32xf32>
    %199 = vector.extract_strided_slice %188 {offsets = [0, 32], sizes = [16, 32], strides = [1, 1]} : vector<16x96xf32> to vector<16x32xf32>
    %200 = vector.extract_strided_slice %190 {offsets = [0, 32], sizes = [16, 32], strides = [1, 1]} : vector<16x96xf32> to vector<16x32xf32>
    %201 = arith.addf %199, %200 : vector<16x32xf32>
    %202 = arith.negf %201 : vector<16x32xf32>
    %203 = math.exp %202 : vector<16x32xf32>
    %cst_50 = arith.constant 1.000000e+00 : f32
    %204 = vector.broadcast %cst_50 : f32 to vector<16x32xf32>
    %205 = arith.addf %204, %203 : vector<16x32xf32>
    %206 = arith.divf %204, %205 : vector<16x32xf32>
    %207 = vector.extract_strided_slice %188 {offsets = [0, 64], sizes = [16, 32], strides = [1, 1]} : vector<16x96xf32> to vector<16x32xf32>
    %208 = vector.extract_strided_slice %190 {offsets = [0, 64], sizes = [16, 32], strides = [1, 1]} : vector<16x96xf32> to vector<16x32xf32>
    %209 = arith.mulf %198, %208 : vector<16x32xf32>
    %210 = arith.addf %207, %209 : vector<16x32xf32>
    %211 = math.tanh %210 : vector<16x32xf32>
    %cst_51 = arith.constant 1.000000e+00 : f32
    %212 = vector.broadcast %cst_51 : f32 to vector<16x32xf32>
    %213 = arith.subf %212, %206 : vector<16x32xf32>
    %214 = arith.mulf %213, %211 : vector<16x32xf32>
    %215 = arith.mulf %206, %184 : vector<16x32xf32>
    %216 = arith.addf %214, %215 : vector<16x32xf32>
    %c160 = arith.constant 160 : index
    %c0_52 = arith.constant 0 : index
    %217 = vector.load %arg3[%c160, %c0_52] : memref<264x12xf32, #tpu.memory_space<vmem>>, vector<32x12xf32>
    %cst_53 = arith.constant dense<0.000000e+00> : vector<16x12xf32>
    %218 = tpu.matmul %216, %217, %cst_53 {dimension_numbers = #tpu.dot_dimension_numbers<[1], [0], [0], [1], [0, 0, 1, 1], [], []>} : vector<16x32xf32>, vector<32x12xf32>, vector<16x12xf32> -> vector<16x12xf32>
    %219 = arith.addf %187, %218 : vector<16x12xf32>
    %220 = vector.extract_strided_slice %14 {offsets = [96, 0], sizes = [16, 96], strides = [1, 1]} : vector<128x96xf32> to vector<16x96xf32>
    %cst_54 = arith.constant dense<0.000000e+00> : vector<16x96xf32>
    %221 = tpu.matmul %216, %1, %cst_54 {dimension_numbers = #tpu.dot_dimension_numbers<[1], [0], [0], [1], [0, 0, 1, 1], [], []>} : vector<16x32xf32>, vector<32x96xf32>, vector<16x96xf32> -> vector<16x96xf32>
    %222 = arith.addf %221, %5 : vector<16x96xf32>
    %223 = vector.extract_strided_slice %220 {offsets = [0, 0], sizes = [16, 32], strides = [1, 1]} : vector<16x96xf32> to vector<16x32xf32>
    %224 = vector.extract_strided_slice %222 {offsets = [0, 0], sizes = [16, 32], strides = [1, 1]} : vector<16x96xf32> to vector<16x32xf32>
    %225 = arith.addf %223, %224 : vector<16x32xf32>
    %226 = arith.negf %225 : vector<16x32xf32>
    %227 = math.exp %226 : vector<16x32xf32>
    %cst_55 = arith.constant 1.000000e+00 : f32
    %228 = vector.broadcast %cst_55 : f32 to vector<16x32xf32>
    %229 = arith.addf %228, %227 : vector<16x32xf32>
    %230 = arith.divf %228, %229 : vector<16x32xf32>
    %231 = vector.extract_strided_slice %220 {offsets = [0, 32], sizes = [16, 32], strides = [1, 1]} : vector<16x96xf32> to vector<16x32xf32>
    %232 = vector.extract_strided_slice %222 {offsets = [0, 32], sizes = [16, 32], strides = [1, 1]} : vector<16x96xf32> to vector<16x32xf32>
    %233 = arith.addf %231, %232 : vector<16x32xf32>
    %234 = arith.negf %233 : vector<16x32xf32>
    %235 = math.exp %234 : vector<16x32xf32>
    %cst_56 = arith.constant 1.000000e+00 : f32
    %236 = vector.broadcast %cst_56 : f32 to vector<16x32xf32>
    %237 = arith.addf %236, %235 : vector<16x32xf32>
    %238 = arith.divf %236, %237 : vector<16x32xf32>
    %239 = vector.extract_strided_slice %220 {offsets = [0, 64], sizes = [16, 32], strides = [1, 1]} : vector<16x96xf32> to vector<16x32xf32>
    %240 = vector.extract_strided_slice %222 {offsets = [0, 64], sizes = [16, 32], strides = [1, 1]} : vector<16x96xf32> to vector<16x32xf32>
    %241 = arith.mulf %230, %240 : vector<16x32xf32>
    %242 = arith.addf %239, %241 : vector<16x32xf32>
    %243 = math.tanh %242 : vector<16x32xf32>
    %cst_57 = arith.constant 1.000000e+00 : f32
    %244 = vector.broadcast %cst_57 : f32 to vector<16x32xf32>
    %245 = arith.subf %244, %238 : vector<16x32xf32>
    %246 = arith.mulf %245, %243 : vector<16x32xf32>
    %247 = arith.mulf %238, %216 : vector<16x32xf32>
    %248 = arith.addf %246, %247 : vector<16x32xf32>
    %c192 = arith.constant 192 : index
    %c0_58 = arith.constant 0 : index
    %249 = vector.load %arg3[%c192, %c0_58] : memref<264x12xf32, #tpu.memory_space<vmem>>, vector<32x12xf32>
    %cst_59 = arith.constant dense<0.000000e+00> : vector<16x12xf32>
    %250 = tpu.matmul %248, %249, %cst_59 {dimension_numbers = #tpu.dot_dimension_numbers<[1], [0], [0], [1], [0, 0, 1, 1], [], []>} : vector<16x32xf32>, vector<32x12xf32>, vector<16x12xf32> -> vector<16x12xf32>
    %251 = arith.addf %219, %250 : vector<16x12xf32>
    %252 = vector.extract_strided_slice %14 {offsets = [112, 0], sizes = [16, 96], strides = [1, 1]} : vector<128x96xf32> to vector<16x96xf32>
    %cst_60 = arith.constant dense<0.000000e+00> : vector<16x96xf32>
    %253 = tpu.matmul %248, %1, %cst_60 {dimension_numbers = #tpu.dot_dimension_numbers<[1], [0], [0], [1], [0, 0, 1, 1], [], []>} : vector<16x32xf32>, vector<32x96xf32>, vector<16x96xf32> -> vector<16x96xf32>
    %254 = arith.addf %253, %5 : vector<16x96xf32>
    %255 = vector.extract_strided_slice %252 {offsets = [0, 0], sizes = [16, 32], strides = [1, 1]} : vector<16x96xf32> to vector<16x32xf32>
    %256 = vector.extract_strided_slice %254 {offsets = [0, 0], sizes = [16, 32], strides = [1, 1]} : vector<16x96xf32> to vector<16x32xf32>
    %257 = arith.addf %255, %256 : vector<16x32xf32>
    %258 = arith.negf %257 : vector<16x32xf32>
    %259 = math.exp %258 : vector<16x32xf32>
    %cst_61 = arith.constant 1.000000e+00 : f32
    %260 = vector.broadcast %cst_61 : f32 to vector<16x32xf32>
    %261 = arith.addf %260, %259 : vector<16x32xf32>
    %262 = arith.divf %260, %261 : vector<16x32xf32>
    %263 = vector.extract_strided_slice %252 {offsets = [0, 32], sizes = [16, 32], strides = [1, 1]} : vector<16x96xf32> to vector<16x32xf32>
    %264 = vector.extract_strided_slice %254 {offsets = [0, 32], sizes = [16, 32], strides = [1, 1]} : vector<16x96xf32> to vector<16x32xf32>
    %265 = arith.addf %263, %264 : vector<16x32xf32>
    %266 = arith.negf %265 : vector<16x32xf32>
    %267 = math.exp %266 : vector<16x32xf32>
    %cst_62 = arith.constant 1.000000e+00 : f32
    %268 = vector.broadcast %cst_62 : f32 to vector<16x32xf32>
    %269 = arith.addf %268, %267 : vector<16x32xf32>
    %270 = arith.divf %268, %269 : vector<16x32xf32>
    %271 = vector.extract_strided_slice %252 {offsets = [0, 64], sizes = [16, 32], strides = [1, 1]} : vector<16x96xf32> to vector<16x32xf32>
    %272 = vector.extract_strided_slice %254 {offsets = [0, 64], sizes = [16, 32], strides = [1, 1]} : vector<16x96xf32> to vector<16x32xf32>
    %273 = arith.mulf %262, %272 : vector<16x32xf32>
    %274 = arith.addf %271, %273 : vector<16x32xf32>
    %275 = math.tanh %274 : vector<16x32xf32>
    %cst_63 = arith.constant 1.000000e+00 : f32
    %276 = vector.broadcast %cst_63 : f32 to vector<16x32xf32>
    %277 = arith.subf %276, %270 : vector<16x32xf32>
    %278 = arith.mulf %277, %275 : vector<16x32xf32>
    %279 = arith.mulf %270, %248 : vector<16x32xf32>
    %280 = arith.addf %278, %279 : vector<16x32xf32>
    %c224 = arith.constant 224 : index
    %c0_64 = arith.constant 0 : index
    %281 = vector.load %arg3[%c224, %c0_64] : memref<264x12xf32, #tpu.memory_space<vmem>>, vector<32x12xf32>
    %cst_65 = arith.constant dense<0.000000e+00> : vector<16x12xf32>
    %282 = tpu.matmul %280, %281, %cst_65 {dimension_numbers = #tpu.dot_dimension_numbers<[1], [0], [0], [1], [0, 0, 1, 1], [], []>} : vector<16x32xf32>, vector<32x12xf32>, vector<16x12xf32> -> vector<16x12xf32>
    %283 = arith.addf %251, %282 : vector<16x12xf32>
    %cst_66 = arith.constant dense<0.000000e+00> : vector<16x32xf32>
    %284 = tpu.matmul %280, %6, %cst_66 {dimension_numbers = #tpu.dot_dimension_numbers<[1], [0], [0], [1], [0, 0, 1, 1], [], []>} : vector<16x32xf32>, vector<32x32xf32>, vector<16x32xf32> -> vector<16x32xf32>
    %285 = vector.broadcast %8 : vector<1x32xf32> to vector<16x32xf32>
    %286 = arith.addf %284, %285 : vector<16x32xf32>
    %cst_67 = arith.constant dense<0.000000e+00> : vector<16x8xf32>
    %287 = tpu.matmul %280, %7, %cst_67 {dimension_numbers = #tpu.dot_dimension_numbers<[1], [0], [0], [1], [0, 0, 1, 1], [], []>} : vector<16x32xf32>, vector<32x8xf32>, vector<16x8xf32> -> vector<16x8xf32>
    %288 = vector.broadcast %9 : vector<1x8xf32> to vector<16x8xf32>
    %289 = arith.addf %287, %288 : vector<16x8xf32>
    %290 = vector.extract_strided_slice %286 {offsets = [0, 0], sizes = [2, 32], strides = [1, 1]} : vector<16x32xf32> to vector<2x32xf32>
    %291 = vector.extract_strided_slice %286 {offsets = [2, 0], sizes = [10, 32], strides = [1, 1]} : vector<16x32xf32> to vector<10x32xf32>
    %292 = vector.shape_cast %291 : vector<10x32xf32> to vector<2x5x32xf32>
    %293 = vector.extract_strided_slice %289 {offsets = [2, 0], sizes = [10, 4], strides = [1, 1]} : vector<16x8xf32> to vector<10x4xf32>
    %294 = arith.negf %293 : vector<10x4xf32>
    %295 = math.exp %294 : vector<10x4xf32>
    %cst_68 = arith.constant 1.000000e+00 : f32
    %296 = vector.broadcast %cst_68 : f32 to vector<10x4xf32>
    %297 = arith.addf %296, %295 : vector<10x4xf32>
    %298 = arith.divf %296, %297 : vector<10x4xf32>
    %299 = vector.shape_cast %298 : vector<10x4xf32> to vector<2x5x4xf32>
    %300 = vector.extract_strided_slice %289 {offsets = [0, 4], sizes = [2, 4], strides = [1, 1]} : vector<16x8xf32> to vector<2x4xf32>
    %301 = vector.shape_cast %290 : vector<2x32xf32> to vector<2x1x32xf32>
    %cst_69 = arith.constant dense<0.000000e+00> : vector<2x1x5xf32>
    %302 = tpu.matmul %301, %292, %cst_69 {dimension_numbers = #tpu.dot_dimension_numbers<[2], [2], [1], [1], [0, 0, 0, 1, 1, 1], [0], [0]>} : vector<2x1x32xf32>, vector<2x5x32xf32>, vector<2x1x5xf32> -> vector<2x1x5xf32>
    %cst_70 = arith.constant dense<0xFF800000> : vector<2x1xf32>
    %303 = vector.multi_reduction <maximumf>, %302, %cst_70 [2] : vector<2x1x5xf32> to vector<2x1xf32>
    %cst_71 = arith.constant 0xFF800000 : f32
    %304 = vector.broadcast %cst_71 : f32 to vector<2x1xf32>
    %305 = arith.maximumf %304, %303 : vector<2x1xf32>
    %306 = vector.shape_cast %305 : vector<2x1xf32> to vector<2x1x1xf32>
    %307 = vector.broadcast %306 : vector<2x1x1xf32> to vector<2x1x5xf32>
    %308 = arith.subf %302, %307 : vector<2x1x5xf32>
    %309 = math.exp %308 : vector<2x1x5xf32>
    %cst_72 = arith.constant dense<0.000000e+00> : vector<2x1xf32>
    %310 = vector.multi_reduction <add>, %309, %cst_72 [2] : vector<2x1x5xf32> to vector<2x1xf32>
    %311 = vector.shape_cast %310 : vector<2x1xf32> to vector<2x1x1xf32>
    %312 = vector.broadcast %311 : vector<2x1x1xf32> to vector<2x1x5xf32>
    %313 = arith.divf %309, %312 : vector<2x1x5xf32>
    %c0_73 = arith.constant 0 : index
    %c0_74 = arith.constant 0 : index
    %c0_75 = arith.constant 0 : index
    %314 = vector.load %arg1[%c0_73, %c0_74, %c0_75] : memref<2x5x4xf32, #tpu.memory_space<vmem>>, vector<2x5x4xf32>
    %cst_76 = arith.constant dense<0.000000e+00> : vector<2x1x4xf32>
    %315 = tpu.matmul %313, %314, %cst_76 {dimension_numbers = #tpu.dot_dimension_numbers<[2], [1], [1], [2], [0, 0, 0, 1, 1, 2], [0], [0]>} : vector<2x1x5xf32>, vector<2x5x4xf32>, vector<2x1x4xf32> -> vector<2x1x4xf32>
    %316 = vector.extract_strided_slice %283 {offsets = [0, 0], sizes = [2, 12], strides = [1, 1]} : vector<16x12xf32> to vector<2x12xf32>
    %317 = vector.broadcast %10 : vector<1x12xf32> to vector<2x12xf32>
    %318 = arith.addf %316, %317 : vector<2x12xf32>
    %319 = vector.shape_cast %318 : vector<2x12xf32> to vector<2x3x4xf32>
    %320 = vector.shape_cast %300 : vector<2x4xf32> to vector<2x1x4xf32>
    %321 = vector.broadcast %320 : vector<2x1x4xf32> to vector<2x3x4xf32>
    %322 = arith.addf %319, %321 : vector<2x3x4xf32>
    %c0_77 = arith.constant 0 : index
    %c0_78 = arith.constant 0 : index
    %c0_79 = arith.constant 0 : index
    %323 = vector.load %arg4[%c0_77, %c0_78, %c0_79] : memref<2x9x4xf32, #tpu.memory_space<vmem>>, vector<2x3x4xf32>
    tpu.vector_store %arg4[%c0_77, %c0_78, %c0_79], %322 {strides = array<i32>} : memref<2x9x4xf32, #tpu.memory_space<vmem>>, vector<2x3x4xf32>,
    %c0_80 = arith.constant 0 : index
    %c3 = arith.constant 3 : index
    %c0_81 = arith.constant 0 : index
    %324 = vector.load %arg4[%c0_80, %c3, %c0_81] : memref<2x9x4xf32, #tpu.memory_space<vmem>>, vector<2x1x4xf32>
    tpu.vector_store %arg4[%c0_80, %c3, %c0_81], %315 {strides = array<i32>} : memref<2x9x4xf32, #tpu.memory_space<vmem>>, vector<2x1x4xf32>,
    %c0_82 = arith.constant 0 : index
    %c4 = arith.constant 4 : index
    %c0_83 = arith.constant 0 : index
    %325 = vector.load %arg4[%c0_82, %c4, %c0_83] : memref<2x9x4xf32, #tpu.memory_space<vmem>>, vector<2x5x4xf32>
    tpu.vector_store %arg4[%c0_82, %c4, %c0_83], %299 {strides = array<i32>} : memref<2x9x4xf32, #tpu.memory_space<vmem>>, vector<2x5x4xf32>,
    return
  }
}

</mosaic_0001>

<llo_original>
// kernel: fudan_forward.1
$region0: #{fudan_forward.1}
  #allocation0 [shape = 'u32[]', space=smem, size = 0x4, offset = 0x4, fixed_abs, tag = 'smem constant byte address 0x4 - core index']
  #allocation1 [shape = 'u32[72,128]{1,0:T(1,128)}', space=vmem, size = 0x9000, scoped, tag = 'internal scratch']
  %s0 = inlined_call_operand.vmem [shape: f32[128,8], index: 0, kind: input, shape index: {}]
  %s1 = inlined_call_operand.vmem [shape: f32[2,5,4], index: 1, kind: input, shape index: {}]
  %s2 = inlined_call_operand.vmem [shape: f32[96,96], index: 2, kind: input, shape index: {}]
  %s3 = inlined_call_operand.vmem [shape: f32[264,12], index: 3, kind: input, shape index: {}]
  %s4 = inlined_call_operand.vmem [shape: f32[2,9,4], index: 4, kind: output, shape index: {}]
  %s5 = sld [smem:[#allocation0]]
  $region26: #{fudan_forward.1} parent=0
    _
  %s7 = ssub.s32 1, %s5
  %s8 = scalar_select 0, %s7, %s5
  // Predicated region
  $region2: #{fudan_forward.1} parent=0 // pred_check
    _
  $region3: #{fudan_forward.1} parent=0 // pred_check_branch
    %10 = sbr.rel (0) target = $region5
  $region4: #{fudan_forward.1} parent=0 // pred_region
    _
  $region5: #{fudan_forward.1} parent=0 // pred_fallthru
    _
  // Predicated region
  $region6: #{fudan_forward.1} parent=0 // pred_check
    _
  $region7: #{fudan_forward.1} parent=0 // pred_check_branch
    %12 = sbr.rel (0) target = $region9
  $region8: #{fudan_forward.1} parent=0 // pred_region
    _
  $region9: #{fudan_forward.1} parent=0 // pred_fallthru
    _
  // Predicated region
  $region10: #{fudan_forward.1} parent=0 // pred_check
    _
  $region11: #{fudan_forward.1} parent=0 // pred_check_branch
    %14 = sbr.rel (0) target = $region13
  $region12: #{fudan_forward.1} parent=0 // pred_region
    _
  $region13: #{fudan_forward.1} parent=0 // pred_fallthru
    _
  // Predicated region
  $region14: #{fudan_forward.1} parent=0 // pred_check
    _
  $region15: #{fudan_forward.1} parent=0 // pred_check_branch
    %16 = sbr.rel (0) target = $region17
  $region16: #{fudan_forward.1} parent=0 // pred_region
    _
  $region17: #{fudan_forward.1} parent=0 // pred_fallthru
    _
  %v17 = vld [vmem:[%s2] sm:$0xff]
  %v18 = vld [vmem:[%s2 + $0x8] sm:$0xff]
  %v19 = vld [vmem:[%s2 + $0x10] sm:$0xff]
  %v20 = vld [vmem:[%s2 + $0x18] sm:$0xff]
  %v21 = vld [vmem:[%s2 + $0x20] sm:$0xff]
  %v22 = vld [vmem:[%s2 + $0x28] sm:$0x1]
  %v23 = vld [vmem:[%s2 + $0x30] sm:$0x1]
  %v24 = vperm.slane %v23, 0
  %v25 = vld [vmem:[%s2 + $0x38] sm:$0xff]
  %v26 = vld [vmem:[%s2 + $0x40] sm:$0xff]
  %v27 = vld [vmem:[%s2 + $0x48] sm:$0xff]
  %v28 = vld [vmem:[%s2 + $0x50] sm:$0xff]
  %v29 = vld [vmem:[%s2 + $0x58] sm:$0x1]
  %v30 = vld [vmem:[%s3 + $0x100] sm:$0x1]
  %v31 = vld [vmem:[%s0] sm:$0xff]
  %v32 = vld [vmem:[%s0 + $0x8] sm:$0xff]
  %v33 = vld [vmem:[%s0 + $0x10] sm:$0xff]
  %v34 = vld [vmem:[%s0 + $0x18] sm:$0xff]
  %v35 = vld [vmem:[%s0 + $0x20] sm:$0xff]
  %v36 = vld [vmem:[%s0 + $0x28] sm:$0xff]
  %v37 = vld [vmem:[%s0 + $0x30] sm:$0xff]
  %v38 = vld [vmem:[%s0 + $0x38] sm:$0xff]
  %v39 = vld [vmem:[%s0 + $0x40] sm:$0xff]
  %v40 = vld [vmem:[%s0 + $0x48] sm:$0xff]
  %v41 = vld [vmem:[%s0 + $0x50] sm:$0xff]
  %v42 = vld [vmem:[%s0 + $0x58] sm:$0xff]
  %v43 = vld [vmem:[%s0 + $0x60] sm:$0xff]
  %v44 = vld [vmem:[%s0 + $0x68] sm:$0xff]
  %v45 = vld [vmem:[%s0 + $0x70] sm:$0xff]
  %v46 = vld [vmem:[%s0 + $0x78] sm:$0xff]
  %v47 = vperm.slane %v22, 0
  %vm48 = vcmask 64512
  %v50 = vsel %vm48, %v31, 0
  %v53 = vsel %vm48, %v32, 0
  %v56 = vsel %vm48, %v33, 0
  %v59 = vsel %vm48, %v34, 0
  %v62 = vsel %vm48, %v35, 0
  %v65 = vsel %vm48, %v36, 0
  %v68 = vsel %vm48, %v37, 0
  %v71 = vsel %vm48, %v38, 0
  %v74 = vsel %vm48, %v39, 0
  %v77 = vsel %vm48, %v40, 0
  %v80 = vsel %vm48, %v41, 0
  %v83 = vsel %vm48, %v42, 0
  %v86 = vsel %vm48, %v43, 0
  %v89 = vsel %vm48, %v44, 0
  %v92 = vsel %vm48, %v45, 0
  %v95 = vsel %vm48, %v46, 0
  %97 = vmatpush.msra.mxu0 0.0
  %98 = vmatpush.msra.mxu0 0.0
  %99 = vmatpush.msra.mxu0 0.0
  %100 = vmatpush.msra.mxu0 0.0
  %101 = vmatpush.msra.mxu0 0.0
  %102 = vmatpush.msra.mxu0 0.0
  %103 = vmatpush.msra.mxu0 0.0
  %104 = vmatpush.msra.mxu0 0.0
  %105 = vmatpush.msra.mxu0 0.0
  %106 = vmatpush.msra.mxu0 0.0
  %107 = vmatpush.msra.mxu0 0.0
  %108 = vmatpush.msra.mxu0 0.0
  %109 = vmatpush.msra.mxu0 0.0
  %110 = vmatpush.msra.mxu0 0.0
  %111 = vmatpush.msra.mxu0 0.0
  %112 = vmatpush.msra.mxu0 %v17
  %113 = vmatmul.f32.gmra.mxu0 %v50
  %v114 = vpop.f32.mrf.mxu0
  %v115 = vadd.f32 %v47, %v114
  %116 = vmatmul.f32.gmra.mxu0 %v53
  %v117 = vpop.f32.mrf.mxu0
  %v118 = vadd.f32 %v47, %v117
  %119 = vmatmul.f32.gmra.mxu0 %v56
  %v120 = vpop.f32.mrf.mxu0
  %v121 = vadd.f32 %v47, %v120
  %122 = vmatmul.f32.gmra.mxu0 %v59
  %v123 = vpop.f32.mrf.mxu0
  %v124 = vadd.f32 %v47, %v123
  %125 = vmatmul.f32.gmra.mxu0 %v62
  %v126 = vpop.f32.mrf.mxu0
  %v127 = vadd.f32 %v47, %v126
  %128 = vmatmul.f32.gmra.mxu0 %v65
  %v129 = vpop.f32.mrf.mxu0
  %v130 = vadd.f32 %v47, %v129
  %131 = vmatmul.f32.gmra.mxu0 %v68
  %v132 = vpop.f32.mrf.mxu0
  %v133 = vadd.f32 %v47, %v132
  %134 = vmatmul.f32.gmra.mxu0 %v71
  %v135 = vpop.f32.mrf.mxu0
  %v136 = vadd.f32 %v47, %v135
  %137 = vmatmul.f32.gmra.mxu0 %v74
  %v138 = vpop.f32.mrf.mxu0
  %v139 = vadd.f32 %v47, %v138
  %140 = vmatmul.f32.gmra.mxu0 %v77
  %v141 = vpop.f32.mrf.mxu0
  %v142 = vadd.f32 %v47, %v141
  %143 = vmatmul.f32.gmra.mxu0 %v80
  %v144 = vpop.f32.mrf.mxu0
  %v145 = vadd.f32 %v47, %v144
  %146 = vmatmul.f32.gmra.mxu0 %v83
  %v147 = vpop.f32.mrf.mxu0
  %v148 = vadd.f32 %v47, %v147
  %149 = vmatmul.f32.gmra.mxu0 %v86
  %v150 = vpop.f32.mrf.mxu0
  %v151 = vadd.f32 %v47, %v150
  %152 = vmatmul.f32.gmra.mxu0 %v89
  %v153 = vpop.f32.mrf.mxu0
  %v154 = vadd.f32 %v47, %v153
  %155 = vmatmul.f32.gmra.mxu0 %v92
  %v156 = vpop.f32.mrf.mxu0
  %v157 = vadd.f32 %v47, %v156
  %158 = vmatmul.f32.gmra.mxu0 %v95
  %v159 = vpop.f32.mrf.mxu0
  %v160 = vadd.f32 %v47, %v159
  %161 = vdwg.mxu0
  %v162 = vlaneseq
  %v163 = vshrl.u32 %v162, 7
  %v164 = vadd.s32 %v163, 8
  %vm165 = vcmp.lt.s32.totalorder %v163, 2
  %vm166 = vcmp.lt.s32.totalorder %v164, 2
  %vm167 = vcmask 261120
  %v169 = vsel %vm167, 0.0, 0
  %171 = vmatpush.msra.mxu0 0.0
  %172 = vmatpush.msra.mxu0 0.0
  %173 = vmatpush.msra.mxu0 0.0
  %174 = vmatpush.msra.mxu0 0.0
  %175 = vmatpush.msra.mxu0 0.0
  %176 = vmatpush.msra.mxu0 0.0
  %177 = vmatpush.msra.mxu0 0.0
  %178 = vmatpush.msra.mxu0 0.0
  %179 = vmatpush.msra.mxu0 0.0
  %180 = vmatpush.msra.mxu0 0.0
  %181 = vmatpush.msra.mxu0 0.0
  %182 = vmatpush.msra.mxu0 0.0
  %183 = vmatpush.msra.mxu0 %v21
  %184 = vmatpush.msra.mxu0 %v20
  %185 = vmatpush.msra.mxu0 %v19
  %186 = vmatpush.msra.mxu0 %v18
  %187 = vmatmul.f32.gmra.mxu0 %v169
  %v188 = vpop.f32.mrf.mxu0
  %v189 = vadd.f32 %v24, %v188
  %190 = vmatmul.f32.gmra.mxu0 %v169
  %v191 = vpop.f32.mrf.mxu0
  %v192 = vadd.f32 %v24, %v191
  %193 = vdwg.mxu0
  %v194 = vadd.f32 %v115, %v189
  %v195 = vadd.f32 %v118, %v192
  %v196 = vxor.u32 %v194, 2147483648
  %v197 = vxor.u32 %v195, 2147483648
  %v198 = vmul.f32 %v196, 1.442695
  %v199 = vpow.pop %v198
  %v200 = vmul.f32 %v197, 1.442695
  %v201 = vpow.pop %v200
  %v202 = vadd.f32 %v199, 1.0
  %v203 = vadd.f32 %v201, 1.0
  %v204 = vrcp.pop %v202
  %v205 = vmul.f32 %v202, %v204
  %v206 = vsub.f32 1.0, %v205
  %v207 = vmul.f32 %v204, %v206
  %v208 = vadd.f32 %v204, %v207
  %vm209 = vweird.f32 %v202
  %vm210 = vweird.f32 %v204
  %vm211 = vmor %vm209, %vm210
  %v212 = vsel %vm211, %v204, %v208
  %v213 = vand.u32 2147483647, %v202
  %vm214 = vcmp.eq.f32.partialorder %v213, 8.507059e+37
  %v215 = vand.u32 %v202, 2147483648
  %v216 = vor.u32 1.1754944e-38, %v215
  %v217 = vsel %vm214, %v216, %v212
  %v218 = vmul.f32 1.0, %v217
  %v219 = vrcp.pop %v203
  %v220 = vmul.f32 %v203, %v219
  %v221 = vsub.f32 1.0, %v220
  %v222 = vmul.f32 %v219, %v221
  %v223 = vadd.f32 %v219, %v222
  %vm224 = vweird.f32 %v203
  %vm225 = vweird.f32 %v219
  %vm226 = vmor %vm224, %vm225
  %v227 = vsel %vm226, %v219, %v223
  %v228 = vand.u32 2147483647, %v203
  %vm229 = vcmp.eq.f32.partialorder %v228, 8.507059e+37
  %v230 = vand.u32 %v203, 2147483648
  %v231 = vor.u32 1.1754944e-38, %v230
  %v232 = vsel %vm229, %v231, %v227
  %v233 = vmul.f32 1.0, %v232
  %236 = vrot.lane.b32.xlu0 %v189, 64
  %v237 = vpop.permute.xlu0 %236
  %238 = vrot.lane.b32.xlu0 %v192, 64
  %v239 = vpop.permute.xlu0 %238
  %v242 = vmul.f32 %v218, %v237
  %v243 = vmul.f32 %v233, %v239
  %246 = vrot.lane.b32.xlu0 %v242, 64
  %v247 = vpop.permute.xlu0 %246
  %248 = vrot.lane.b32.xlu0 %v243, 64
  %v249 = vpop.permute.xlu0 %248
  %v252 = vadd.f32 %v115, %v247
  %v253 = vadd.f32 %v118, %v249
  %v254 = vtanh.pop %v252
  %v255 = vtanh.pop %v253
  %v256 = vsub.f32 1.0, %v218
  %v257 = vsub.f32 1.0, %v233
  %260 = vrot.lane.b32.xlu0 %v254, 96
  %v261 = vpop.permute.xlu0 %260
  %262 = vrot.lane.b32.xlu0 %v255, 96
  %v263 = vpop.permute.xlu0 %262
  %v266 = vmul.f32 %v256, %v261
  %v267 = vmul.f32 %v257, %v263
  %v268 = vmul.f32 %v218, 0.0
  %v269 = vmul.f32 %v233, 0.0
  %v270 = vadd.f32 %v266, %v268
  %v271 = vadd.f32 %v267, %v269
  %v272 = vsel %vm165, 1, 0
  %v273 = vsel %vm166, 1, 0
  %vm274 = vcmp.eq.s32.totalorder %v272, 1
  %vm275 = vcmp.eq.s32.totalorder %v273, 1
  %v276 = vsel %vm274, %v270, 0.0
  %v277 = vsel %vm275, %v271, 0.0
  %v278 = vld [vmem:[%s3] sm:$0xff]
  %v279 = vld [vmem:[%s3 + $0x8] sm:$0xff]
  %v280 = vld [vmem:[%s3 + $0x10] sm:$0xff]
  %v281 = vld [vmem:[%s3 + $0x18] sm:$0xff]
  %284 = vrot.lane.b32.xlu0 %v276, 96
  %v285 = vpop.permute.xlu0 %284
  %286 = vrot.lane.b32.xlu0 %v277, 96
  %v287 = vpop.permute.xlu0 %286
  %v288 = vsel %vm167, %v285, 0
  %v290 = vsel %vm167, %v287, 0
  %292 = vmatpush.msra.mxu0 0.0
  %293 = vmatpush.msra.mxu0 0.0
  %294 = vmatpush.msra.mxu0 0.0
  %295 = vmatpush.msra.mxu0 0.0
  %296 = vmatpush.msra.mxu0 0.0
  %297 = vmatpush.msra.mxu0 0.0
  %298 = vmatpush.msra.mxu0 0.0
  %299 = vmatpush.msra.mxu0 0.0
  %300 = vmatpush.msra.mxu0 0.0
  %301 = vmatpush.msra.mxu0 0.0
  %302 = vmatpush.msra.mxu0 0.0
  %303 = vmatpush.msra.mxu0 0.0
  %304 = vmatpush.msra.mxu0 %v21
  %305 = vmatpush.msra.mxu0 %v20
  %306 = vmatpush.msra.mxu0 %v19
  %307 = vmatpush.msra.mxu0 %v18
  %308 = vmatmul.f32.gmra.mxu0 %v288
  %v309 = vpop.f32.mrf.mxu0
  %v310 = vadd.f32 %v24, %v309
  %311 = vmatmul.f32.gmra.mxu0 %v290
  %v312 = vpop.f32.mrf.mxu0
  %v313 = vadd.f32 %v24, %v312
  %314 = vdwg.mxu0
  %v315 = vadd.f32 %v121, %v310
  %v316 = vadd.f32 %v124, %v313
  %v317 = vxor.u32 %v315, 2147483648
  %v318 = vxor.u32 %v316, 2147483648
  %v319 = vmul.f32 %v317, 1.442695
  %v320 = vpow.pop %v319
  %v321 = vmul.f32 %v318, 1.442695
  %v322 = vpow.pop %v321
  %v323 = vadd.f32 %v320, 1.0
  %v324 = vadd.f32 %v322, 1.0
  %v325 = vrcp.pop %v323
  %v326 = vmul.f32 %v323, %v325
  %v327 = vsub.f32 1.0, %v326
  %v328 = vmul.f32 %v325, %v327
  %v329 = vadd.f32 %v325, %v328
  %vm330 = vweird.f32 %v323
  %vm331 = vweird.f32 %v325
  %vm332 = vmor %vm330, %vm331
  %v333 = vsel %vm332, %v325, %v329
  %v334 = vand.u32 2147483647, %v323
  %vm335 = vcmp.eq.f32.partialorder %v334, 8.507059e+37
  %v336 = vand.u32 %v323, 2147483648
  %v337 = vor.u32 1.1754944e-38, %v336
  %v338 = vsel %vm335, %v337, %v333
  %v339 = vmul.f32 1.0, %v338
  %v340 = vrcp.pop %v324
  %v341 = vmul.f32 %v324, %v340
  %v342 = vsub.f32 1.0, %v341
  %v343 = vmul.f32 %v340, %v342
  %v344 = vadd.f32 %v340, %v343
  %vm345 = vweird.f32 %v324
  %vm346 = vweird.f32 %v340
  %vm347 = vmor %vm345, %vm346
  %v348 = vsel %vm347, %v340, %v344
  %v349 = vand.u32 2147483647, %v324
  %vm350 = vcmp.eq.f32.partialorder %v349, 8.507059e+37
  %v351 = vand.u32 %v324, 2147483648
  %v352 = vor.u32 1.1754944e-38, %v351
  %v353 = vsel %vm350, %v352, %v348
  %v354 = vmul.f32 1.0, %v353
  %357 = vrot.lane.b32.xlu0 %v310, 64
  %v358 = vpop.permute.xlu0 %357
  %359 = vrot.lane.b32.xlu0 %v313, 64
  %v360 = vpop.permute.xlu0 %359
  %v363 = vmul.f32 %v339, %v358
  %v364 = vmul.f32 %v354, %v360
  %367 = vrot.lane.b32.xlu0 %v363, 64
  %v368 = vpop.permute.xlu0 %367
  %369 = vrot.lane.b32.xlu0 %v364, 64
  %v370 = vpop.permute.xlu0 %369
  %v373 = vadd.f32 %v121, %v368
  %v374 = vadd.f32 %v124, %v370
  %v375 = vtanh.pop %v373
  %v376 = vtanh.pop %v374
  %v377 = vsub.f32 1.0, %v339
  %v378 = vsub.f32 1.0, %v354
  %381 = vrot.lane.b32.xlu0 %v375, 96
  %v382 = vpop.permute.xlu0 %381
  %383 = vrot.lane.b32.xlu0 %v376, 96
  %v384 = vpop.permute.xlu0 %383
  %v387 = vmul.f32 %v377, %v382
  %v388 = vmul.f32 %v378, %v384
  %v389 = vmul.f32 %v339, %v276
  %v390 = vmul.f32 %v354, %v277
  %v391 = vadd.f32 %v387, %v389
  %v392 = vadd.f32 %v388, %v390
  %v393 = vsel %vm274, %v391, 0.0
  %v394 = vsel %vm275, %v392, 0.0
  %v395 = vld [vmem:[%s3 + $0x20] sm:$0xff]
  %v396 = vld [vmem:[%s3 + $0x28] sm:$0xff]
  %v397 = vld [vmem:[%s3 + $0x30] sm:$0xff]
  %v398 = vld [vmem:[%s3 + $0x38] sm:$0xff]
  %401 = vrot.lane.b32.xlu0 %v393, 96
  %v402 = vpop.permute.xlu0 %401
  %403 = vrot.lane.b32.xlu0 %v394, 96
  %v404 = vpop.permute.xlu0 %403
  %v405 = vsel %vm167, %v402, 0
  %v407 = vsel %vm167, %v404, 0
  %409 = vmatpush.msra.mxu0 0.0
  %410 = vmatpush.msra.mxu0 0.0
  %411 = vmatpush.msra.mxu0 0.0
  %412 = vmatpush.msra.mxu0 0.0
  %413 = vmatpush.msra.mxu0 0.0
  %414 = vmatpush.msra.mxu0 0.0
  %415 = vmatpush.msra.mxu0 0.0
  %416 = vmatpush.msra.mxu0 0.0
  %417 = vmatpush.msra.mxu0 0.0
  %418 = vmatpush.msra.mxu0 0.0
  %419 = vmatpush.msra.mxu0 0.0
  %420 = vmatpush.msra.mxu0 0.0
  %421 = vmatpush.msra.mxu0 %v398
  %422 = vmatpush.msra.mxu0 %v397
  %423 = vmatpush.msra.mxu0 %v396
  %424 = vmatpush.msra.mxu0 %v395
  %425 = vmatmul.f32.gmra.mxu0 %v405
  %v426 = vpop.f32.mrf.mxu0
  %v427 = vadd.f32 0.0, %v426
  %428 = vmatmul.f32.gmra.mxu0 %v407
  %v429 = vpop.f32.mrf.mxu0
  %430 = vdwg.mxu0
  %431 = vmatpush.msra.mxu0 0.0
  %432 = vmatpush.msra.mxu0 0.0
  %433 = vmatpush.msra.mxu0 0.0
  %434 = vmatpush.msra.mxu0 0.0
  %435 = vmatpush.msra.mxu0 0.0
  %436 = vmatpush.msra.mxu0 0.0
  %437 = vmatpush.msra.mxu0 0.0
  %438 = vmatpush.msra.mxu0 0.0
  %439 = vmatpush.msra.mxu0 0.0
  %440 = vmatpush.msra.mxu0 0.0
  %441 = vmatpush.msra.mxu0 0.0
  %442 = vmatpush.msra.mxu0 0.0
  %443 = vmatpush.msra.mxu0 %v281
  %444 = vmatpush.msra.mxu0 %v280
  %445 = vmatpush.msra.mxu0 %v279
  %446 = vmatpush.msra.mxu0 %v278
  %447 = vmatmul.f32.gmra.mxu0 %v288
  %v448 = vpop.f32.mrf.mxu0
  %v449 = vadd.f32 %v427, %v448
  %450 = vmatmul.f32.gmra.mxu0 %v290
  %v451 = vpop.f32.mrf.mxu0
  %452 = vdwg.mxu0
  %453 = vmatpush.msra.mxu0 0.0
  %454 = vmatpush.msra.mxu0 0.0
  %455 = vmatpush.msra.mxu0 0.0
  %456 = vmatpush.msra.mxu0 0.0
  %457 = vmatpush.msra.mxu0 0.0
  %458 = vmatpush.msra.mxu0 0.0
  %459 = vmatpush.msra.mxu0 0.0
  %460 = vmatpush.msra.mxu0 0.0
  %461 = vmatpush.msra.mxu0 0.0
  %462 = vmatpush.msra.mxu0 0.0
  %463 = vmatpush.msra.mxu0 0.0
  %464 = vmatpush.msra.mxu0 0.0
  %465 = vmatpush.msra.mxu0 %v21
  %466 = vmatpush.msra.mxu0 %v20
  %467 = vmatpush.msra.mxu0 %v19
  %468 = vmatpush.msra.mxu0 %v18
  %469 = vmatmul.f32.gmra.mxu0 %v405
  %v470 = vpop.f32.mrf.mxu0
  %v471 = vadd.f32 %v24, %v470
  %472 = vmatmul.f32.gmra.mxu0 %v407
  %v473 = vpop.f32.mrf.mxu0
  %v474 = vadd.f32 %v24, %v473
  %475 = vdwg.mxu0
  %v476 = vadd.f32 %v127, %v471
  %v477 = vadd.f32 %v130, %v474
  %v478 = vxor.u32 %v476, 2147483648
  %v479 = vxor.u32 %v477, 2147483648
  %v480 = vmul.f32 %v478, 1.442695
  %v481 = vpow.pop %v480
  %v482 = vmul.f32 %v479, 1.442695
  %v483 = vpow.pop %v482
  %v484 = vadd.f32 %v481, 1.0
  %v485 = vadd.f32 %v483, 1.0
  %v486 = vrcp.pop %v484
  %v487 = vmul.f32 %v484, %v486
  %v488 = vsub.f32 1.0, %v487
  %v489 = vmul.f32 %v486, %v488
  %v490 = vadd.f32 %v486, %v489
  %vm491 = vweird.f32 %v484
  %vm492 = vweird.f32 %v486
  %vm493 = vmor %vm491, %vm492
  %v494 = vsel %vm493, %v486, %v490
  %v495 = vand.u32 2147483647, %v484
  %vm496 = vcmp.eq.f32.partialorder %v495, 8.507059e+37
  %v497 = vand.u32 %v484, 2147483648
  %v498 = vor.u32 1.1754944e-38, %v497
  %v499 = vsel %vm496, %v498, %v494
  %v500 = vmul.f32 1.0, %v499
  %v501 = vrcp.pop %v485
  %v502 = vmul.f32 %v485, %v501
  %v503 = vsub.f32 1.0, %v502
  %v504 = vmul.f32 %v501, %v503
  %v505 = vadd.f32 %v501, %v504
  %vm506 = vweird.f32 %v485
  %vm507 = vweird.f32 %v501
  %vm508 = vmor %vm506, %vm507
  %v509 = vsel %vm508, %v501, %v505
  %v510 = vand.u32 2147483647, %v485
  %vm511 = vcmp.eq.f32.partialorder %v510, 8.507059e+37
  %v512 = vand.u32 %v485, 2147483648
  %v513 = vor.u32 1.1754944e-38, %v512
  %v514 = vsel %vm511, %v513, %v509
  %v515 = vmul.f32 1.0, %v514
  %518 = vrot.lane.b32.xlu0 %v471, 64
  %v519 = vpop.permute.xlu0 %518
  %520 = vrot.lane.b32.xlu0 %v474, 64
  %v521 = vpop.permute.xlu0 %520
  %v524 = vmul.f32 %v500, %v519
  %v525 = vmul.f32 %v515, %v521
  %528 = vrot.lane.b32.xlu0 %v524, 64
  %v529 = vpop.permute.xlu0 %528
  %530 = vrot.lane.b32.xlu0 %v525, 64
  %v531 = vpop.permute.xlu0 %530
  %v534 = vadd.f32 %v127, %v529
  %v535 = vadd.f32 %v130, %v531
  %v536 = vtanh.pop %v534
  %v537 = vtanh.pop %v535
  %v538 = vsub.f32 1.0, %v500
  %v539 = vsub.f32 1.0, %v515
  %542 = vrot.lane.b32.xlu0 %v536, 96
  %v543 = vpop.permute.xlu0 %542
  %544 = vrot.lane.b32.xlu0 %v537, 96
  %v545 = vpop.permute.xlu0 %544
  %v548 = vmul.f32 %v538, %v543
  %v549 = vmul.f32 %v539, %v545
  %v550 = vmul.f32 %v500, %v393
  %v551 = vmul.f32 %v515, %v394
  %v552 = vadd.f32 %v548, %v550
  %v553 = vadd.f32 %v549, %v551
  %v554 = vld [vmem:[%s3 + $0x40] sm:$0xff]
  %v555 = vld [vmem:[%s3 + $0x48] sm:$0xff]
  %v556 = vld [vmem:[%s3 + $0x50] sm:$0xff]
  %v557 = vld [vmem:[%s3 + $0x58] sm:$0xff]
  %560 = vrot.lane.b32.xlu0 %v552, 96
  %v561 = vpop.permute.xlu0 %560
  %562 = vrot.lane.b32.xlu0 %v553, 96
  %v563 = vpop.permute.xlu0 %562
  %v564 = vsel %vm167, %v561, 0
  %v566 = vsel %vm167, %v563, 0
  %568 = vmatpush.msra.mxu0 0.0
  %569 = vmatpush.msra.mxu0 0.0
  %570 = vmatpush.msra.mxu0 0.0
  %571 = vmatpush.msra.mxu0 0.0
  %572 = vmatpush.msra.mxu0 0.0
  %573 = vmatpush.msra.mxu0 0.0
  %574 = vmatpush.msra.mxu0 0.0
  %575 = vmatpush.msra.mxu0 0.0
  %576 = vmatpush.msra.mxu0 0.0
  %577 = vmatpush.msra.mxu0 0.0
  %578 = vmatpush.msra.mxu0 0.0
  %579 = vmatpush.msra.mxu0 0.0
  %580 = vmatpush.msra.mxu0 %v557
  %581 = vmatpush.msra.mxu0 %v556
  %582 = vmatpush.msra.mxu0 %v555
  %583 = vmatpush.msra.mxu0 %v554
  %584 = vmatmul.f32.gmra.mxu0 %v564
  %v585 = vpop.f32.mrf.mxu0
  %v586 = vadd.f32 0.0, %v585
  %587 = vmatmul.f32.gmra.mxu0 %v566
  %v588 = vpop.f32.mrf.mxu0
  %589 = vdwg.mxu0
  %v590 = vadd.f32 %v449, %v586
  %591 = vmatpush.msra.mxu0 0.0
  %592 = vmatpush.msra.mxu0 0.0
  %593 = vmatpush.msra.mxu0 0.0
  %594 = vmatpush.msra.mxu0 0.0
  %595 = vmatpush.msra.mxu0 0.0
  %596 = vmatpush.msra.mxu0 0.0
  %597 = vmatpush.msra.mxu0 0.0
  %598 = vmatpush.msra.mxu0 0.0
  %599 = vmatpush.msra.mxu0 0.0
  %600 = vmatpush.msra.mxu0 0.0
  %601 = vmatpush.msra.mxu0 0.0
  %602 = vmatpush.msra.mxu0 0.0
  %603 = vmatpush.msra.mxu0 %v21
  %604 = vmatpush.msra.mxu0 %v20
  %605 = vmatpush.msra.mxu0 %v19
  %606 = vmatpush.msra.mxu0 %v18
  %607 = vmatmul.f32.gmra.mxu0 %v564
  %v608 = vpop.f32.mrf.mxu0
  %v609 = vadd.f32 %v24, %v608
  %610 = vmatmul.f32.gmra.mxu0 %v566
  %v611 = vpop.f32.mrf.mxu0
  %v612 = vadd.f32 %v24, %v611
  %613 = vdwg.mxu0
  %v614 = vadd.f32 %v133, %v609
  %v615 = vadd.f32 %v136, %v612
  %v616 = vxor.u32 %v614, 2147483648
  %v617 = vxor.u32 %v615, 2147483648
  %v618 = vmul.f32 %v616, 1.442695
  %v619 = vpow.pop %v618
  %v620 = vmul.f32 %v617, 1.442695
  %v621 = vpow.pop %v620
  %v622 = vadd.f32 %v619, 1.0
  %v623 = vadd.f32 %v621, 1.0
  %v624 = vrcp.pop %v622
  %v625 = vmul.f32 %v622, %v624
  %v626 = vsub.f32 1.0, %v625
  %v627 = vmul.f32 %v624, %v626
  %v628 = vadd.f32 %v624, %v627
  %vm629 = vweird.f32 %v622
  %vm630 = vweird.f32 %v624
  %vm631 = vmor %vm629, %vm630
  %v632 = vsel %vm631, %v624, %v628
  %v633 = vand.u32 2147483647, %v622
  %vm634 = vcmp.eq.f32.partialorder %v633, 8.507059e+37
  %v635 = vand.u32 %v622, 2147483648
  %v636 = vor.u32 1.1754944e-38, %v635
  %v637 = vsel %vm634, %v636, %v632
  %v638 = vmul.f32 1.0, %v637
  %v639 = vrcp.pop %v623
  %v640 = vmul.f32 %v623, %v639
  %v641 = vsub.f32 1.0, %v640
  %v642 = vmul.f32 %v639, %v641
  %v643 = vadd.f32 %v639, %v642
  %vm644 = vweird.f32 %v623
  %vm645 = vweird.f32 %v639
  %vm646 = vmor %vm644, %vm645
  %v647 = vsel %vm646, %v639, %v643
  %v648 = vand.u32 2147483647, %v623
  %vm649 = vcmp.eq.f32.partialorder %v648, 8.507059e+37
  %v650 = vand.u32 %v623, 2147483648
  %v651 = vor.u32 1.1754944e-38, %v650
  %v652 = vsel %vm649, %v651, %v647
  %v653 = vmul.f32 1.0, %v652
  %656 = vrot.lane.b32.xlu0 %v609, 64
  %v657 = vpop.permute.xlu0 %656
  %658 = vrot.lane.b32.xlu0 %v612, 64
  %v659 = vpop.permute.xlu0 %658
  %v662 = vmul.f32 %v638, %v657
  %v663 = vmul.f32 %v653, %v659
  %666 = vrot.lane.b32.xlu0 %v662, 64
  %v667 = vpop.permute.xlu0 %666
  %668 = vrot.lane.b32.xlu0 %v663, 64
  %v669 = vpop.permute.xlu0 %668
  %v672 = vadd.f32 %v133, %v667
  %v673 = vadd.f32 %v136, %v669
  %v674 = vtanh.pop %v672
  %v675 = vtanh.pop %v673
  %v676 = vsub.f32 1.0, %v638
  %v677 = vsub.f32 1.0, %v653
  %680 = vrot.lane.b32.xlu0 %v674, 96
  %v681 = vpop.permute.xlu0 %680
  %682 = vrot.lane.b32.xlu0 %v675, 96
  %v683 = vpop.permute.xlu0 %682
  %v686 = vmul.f32 %v676, %v681
  %v687 = vmul.f32 %v677, %v683
  %v688 = vmul.f32 %v638, %v552
  %v689 = vmul.f32 %v653, %v553
  %v690 = vadd.f32 %v686, %v688
  %v691 = vadd.f32 %v687, %v689
  %v692 = vld [vmem:[%s3 + $0x60] sm:$0xff]
  %v693 = vld [vmem:[%s3 + $0x68] sm:$0xff]
  %v694 = vld [vmem:[%s3 + $0x70] sm:$0xff]
  %v695 = vld [vmem:[%s3 + $0x78] sm:$0xff]
  %698 = vrot.lane.b32.xlu0 %v690, 96
  %v699 = vpop.permute.xlu0 %698
  %700 = vrot.lane.b32.xlu0 %v691, 96
  %v701 = vpop.permute.xlu0 %700
  %v702 = vsel %vm167, %v699, 0
  %v704 = vsel %vm167, %v701, 0
  %706 = vmatpush.msra.mxu0 0.0
  %707 = vmatpush.msra.mxu0 0.0
  %708 = vmatpush.msra.mxu0 0.0
  %709 = vmatpush.msra.mxu0 0.0
  %710 = vmatpush.msra.mxu0 0.0
  %711 = vmatpush.msra.mxu0 0.0
  %712 = vmatpush.msra.mxu0 0.0
  %713 = vmatpush.msra.mxu0 0.0
  %714 = vmatpush.msra.mxu0 0.0
  %715 = vmatpush.msra.mxu0 0.0
  %716 = vmatpush.msra.mxu0 0.0
  %717 = vmatpush.msra.mxu0 0.0
  %718 = vmatpush.msra.mxu0 %v695
  %719 = vmatpush.msra.mxu0 %v694
  %720 = vmatpush.msra.mxu0 %v693
  %721 = vmatpush.msra.mxu0 %v692
  %722 = vmatmul.f32.gmra.mxu0 %v702
  %v723 = vpop.f32.mrf.mxu0
  %v724 = vadd.f32 0.0, %v723
  %725 = vmatmul.f32.gmra.mxu0 %v704
  %v726 = vpop.f32.mrf.mxu0
  %727 = vdwg.mxu0
  %v728 = vadd.f32 %v590, %v724
  %729 = vmatpush.msra.mxu0 0.0
  %730 = vmatpush.msra.mxu0 0.0
  %731 = vmatpush.msra.mxu0 0.0
  %732 = vmatpush.msra.mxu0 0.0
  %733 = vmatpush.msra.mxu0 0.0
  %734 = vmatpush.msra.mxu0 0.0
  %735 = vmatpush.msra.mxu0 0.0
  %736 = vmatpush.msra.mxu0 0.0
  %737 = vmatpush.msra.mxu0 0.0
  %738 = vmatpush.msra.mxu0 0.0
  %739 = vmatpush.msra.mxu0 0.0
  %740 = vmatpush.msra.mxu0 0.0
  %741 = vmatpush.msra.mxu0 %v21
  %742 = vmatpush.msra.mxu0 %v20
  %743 = vmatpush.msra.mxu0 %v19
  %744 = vmatpush.msra.mxu0 %v18
  %745 = vmatmul.f32.gmra.mxu0 %v702
  %v746 = vpop.f32.mrf.mxu0
  %v747 = vadd.f32 %v24, %v746
  %748 = vmatmul.f32.gmra.mxu0 %v704
  %v749 = vpop.f32.mrf.mxu0
  %v750 = vadd.f32 %v24, %v749
  %751 = vdwg.mxu0
  %v752 = vadd.f32 %v139, %v747
  %v753 = vadd.f32 %v142, %v750
  %v754 = vxor.u32 %v752, 2147483648
  %v755 = vxor.u32 %v753, 2147483648
  %v756 = vmul.f32 %v754, 1.442695
  %v757 = vpow.pop %v756
  %v758 = vmul.f32 %v755, 1.442695
  %v759 = vpow.pop %v758
  %v760 = vadd.f32 %v757, 1.0
  %v761 = vadd.f32 %v759, 1.0
  %v762 = vrcp.pop %v760
  %v763 = vmul.f32 %v760, %v762
  %v764 = vsub.f32 1.0, %v763
  %v765 = vmul.f32 %v762, %v764
  %v766 = vadd.f32 %v762, %v765
  %vm767 = vweird.f32 %v760
  %vm768 = vweird.f32 %v762
  %vm769 = vmor %vm767, %vm768
  %v770 = vsel %vm769, %v762, %v766
  %v771 = vand.u32 2147483647, %v760
  %vm772 = vcmp.eq.f32.partialorder %v771, 8.507059e+37
  %v773 = vand.u32 %v760, 2147483648
  %v774 = vor.u32 1.1754944e-38, %v773
  %v775 = vsel %vm772, %v774, %v770
  %v776 = vmul.f32 1.0, %v775
  %v777 = vrcp.pop %v761
  %v778 = vmul.f32 %v761, %v777
  %v779 = vsub.f32 1.0, %v778
  %v780 = vmul.f32 %v777, %v779
  %v781 = vadd.f32 %v777, %v780
  %vm782 = vweird.f32 %v761
  %vm783 = vweird.f32 %v777
  %vm784 = vmor %vm782, %vm783
  %v785 = vsel %vm784, %v777, %v781
  %v786 = vand.u32 2147483647, %v761
  %vm787 = vcmp.eq.f32.partialorder %v786, 8.507059e+37
  %v788 = vand.u32 %v761, 2147483648
  %v789 = vor.u32 1.1754944e-38, %v788
  %v790 = vsel %vm787, %v789, %v785
  %v791 = vmul.f32 1.0, %v790
  %794 = vrot.lane.b32.xlu0 %v747, 64
  %v795 = vpop.permute.xlu0 %794
  %796 = vrot.lane.b32.xlu0 %v750, 64
  %v797 = vpop.permute.xlu0 %796
  %v800 = vmul.f32 %v776, %v795
  %v801 = vmul.f32 %v791, %v797
  %804 = vrot.lane.b32.xlu0 %v800, 64
  %v805 = vpop.permute.xlu0 %804
  %806 = vrot.lane.b32.xlu0 %v801, 64
  %v807 = vpop.permute.xlu0 %806
  %v810 = vadd.f32 %v139, %v805
  %v811 = vadd.f32 %v142, %v807
  %v812 = vtanh.pop %v810
  %v813 = vtanh.pop %v811
  %v814 = vsub.f32 1.0, %v776
  %v815 = vsub.f32 1.0, %v791
  %818 = vrot.lane.b32.xlu0 %v812, 96
  %v819 = vpop.permute.xlu0 %818
  %820 = vrot.lane.b32.xlu0 %v813, 96
  %v821 = vpop.permute.xlu0 %820
  %v824 = vmul.f32 %v814, %v819
  %v825 = vmul.f32 %v815, %v821
  %v826 = vmul.f32 %v776, %v690
  %v827 = vmul.f32 %v791, %v691
  %v828 = vadd.f32 %v824, %v826
  %v829 = vadd.f32 %v825, %v827
  %v830 = vld [vmem:[%s3 + $0x80] sm:$0xff]
  %v831 = vld [vmem:[%s3 + $0x88] sm:$0xff]
  %v832 = vld [vmem:[%s3 + $0x90] sm:$0xff]
  %v833 = vld [vmem:[%s3 + $0x98] sm:$0xff]
  %836 = vrot.lane.b32.xlu0 %v828, 96
  %v837 = vpop.permute.xlu0 %836
  %838 = vrot.lane.b32.xlu0 %v829, 96
  %v839 = vpop.permute.xlu0 %838
  %v840 = vsel %vm167, %v837, 0
  %v842 = vsel %vm167, %v839, 0
  %844 = vmatpush.msra.mxu0 0.0
  %845 = vmatpush.msra.mxu0 0.0
  %846 = vmatpush.msra.mxu0 0.0
  %847 = vmatpush.msra.mxu0 0.0
  %848 = vmatpush.msra.mxu0 0.0
  %849 = vmatpush.msra.mxu0 0.0
  %850 = vmatpush.msra.mxu0 0.0
  %851 = vmatpush.msra.mxu0 0.0
  %852 = vmatpush.msra.mxu0 0.0
  %853 = vmatpush.msra.mxu0 0.0
  %854 = vmatpush.msra.mxu0 0.0
  %855 = vmatpush.msra.mxu0 0.0
  %856 = vmatpush.msra.mxu0 %v833
  %857 = vmatpush.msra.mxu0 %v832
  %858 = vmatpush.msra.mxu0 %v831
  %859 = vmatpush.msra.mxu0 %v830
  %860 = vmatmul.f32.gmra.mxu0 %v840
  %v861 = vpop.f32.mrf.mxu0
  %v862 = vadd.f32 0.0, %v861
  %863 = vmatmul.f32.gmra.mxu0 %v842
  %v864 = vpop.f32.mrf.mxu0
  %865 = vdwg.mxu0
  %v866 = vadd.f32 %v728, %v862
  %867 = vmatpush.msra.mxu0 0.0
  %868 = vmatpush.msra.mxu0 0.0
  %869 = vmatpush.msra.mxu0 0.0
  %870 = vmatpush.msra.mxu0 0.0
  %871 = vmatpush.msra.mxu0 0.0
  %872 = vmatpush.msra.mxu0 0.0
  %873 = vmatpush.msra.mxu0 0.0
  %874 = vmatpush.msra.mxu0 0.0
  %875 = vmatpush.msra.mxu0 0.0
  %876 = vmatpush.msra.mxu0 0.0
  %877 = vmatpush.msra.mxu0 0.0
  %878 = vmatpush.msra.mxu0 0.0
  %879 = vmatpush.msra.mxu0 %v21
  %880 = vmatpush.msra.mxu0 %v20
  %881 = vmatpush.msra.mxu0 %v19
  %882 = vmatpush.msra.mxu0 %v18
  %883 = vmatmul.f32.gmra.mxu0 %v840
  %v884 = vpop.f32.mrf.mxu0
  %v885 = vadd.f32 %v24, %v884
  %886 = vmatmul.f32.gmra.mxu0 %v842
  %v887 = vpop.f32.mrf.mxu0
  %v888 = vadd.f32 %v24, %v887
  %889 = vdwg.mxu0
  %v890 = vadd.f32 %v145, %v885
  %v891 = vadd.f32 %v148, %v888
  %v892 = vxor.u32 %v890, 2147483648
  %v893 = vxor.u32 %v891, 2147483648
  %v894 = vmul.f32 %v892, 1.442695
  %v895 = vpow.pop %v894
  %v896 = vmul.f32 %v893, 1.442695
  %v897 = vpow.pop %v896
  %v898 = vadd.f32 %v895, 1.0
  %v899 = vadd.f32 %v897, 1.0
  %v900 = vrcp.pop %v898
  %v901 = vmul.f32 %v898, %v900
  %v902 = vsub.f32 1.0, %v901
  %v903 = vmul.f32 %v900, %v902
  %v904 = vadd.f32 %v900, %v903
  %vm905 = vweird.f32 %v898
  %vm906 = vweird.f32 %v900
  %vm907 = vmor %vm905, %vm906
  %v908 = vsel %vm907, %v900, %v904
  %v909 = vand.u32 2147483647, %v898
  %vm910 = vcmp.eq.f32.partialorder %v909, 8.507059e+37
  %v911 = vand.u32 %v898, 2147483648
  %v912 = vor.u32 1.1754944e-38, %v911
  %v913 = vsel %vm910, %v912, %v908
  %v914 = vmul.f32 1.0, %v913
  %v915 = vrcp.pop %v899
  %v916 = vmul.f32 %v899, %v915
  %v917 = vsub.f32 1.0, %v916
  %v918 = vmul.f32 %v915, %v917
  %v919 = vadd.f32 %v915, %v918
  %vm920 = vweird.f32 %v899
  %vm921 = vweird.f32 %v915
  %vm922 = vmor %vm920, %vm921
  %v923 = vsel %vm922, %v915, %v919
  %v924 = vand.u32 2147483647, %v899
  %vm925 = vcmp.eq.f32.partialorder %v924, 8.507059e+37
  %v926 = vand.u32 %v899, 2147483648
  %v927 = vor.u32 1.1754944e-38, %v926
  %v928 = vsel %vm925, %v927, %v923
  %v929 = vmul.f32 1.0, %v928
  %932 = vrot.lane.b32.xlu0 %v885, 64
  %v933 = vpop.permute.xlu0 %932
  %934 = vrot.lane.b32.xlu0 %v888, 64
  %v935 = vpop.permute.xlu0 %934
  %v938 = vmul.f32 %v914, %v933
  %v939 = vmul.f32 %v929, %v935
  %942 = vrot.lane.b32.xlu0 %v938, 64
  %v943 = vpop.permute.xlu0 %942
  %944 = vrot.lane.b32.xlu0 %v939, 64
  %v945 = vpop.permute.xlu0 %944
  %v948 = vadd.f32 %v145, %v943
  %v949 = vadd.f32 %v148, %v945
  %v950 = vtanh.pop %v948
  %v951 = vtanh.pop %v949
  %v952 = vsub.f32 1.0, %v914
  %v953 = vsub.f32 1.0, %v929
  %956 = vrot.lane.b32.xlu0 %v950, 96
  %v957 = vpop.permute.xlu0 %956
  %958 = vrot.lane.b32.xlu0 %v951, 96
  %v959 = vpop.permute.xlu0 %958
  %v962 = vmul.f32 %v952, %v957
  %v963 = vmul.f32 %v953, %v959
  %v964 = vmul.f32 %v914, %v828
  %v965 = vmul.f32 %v929, %v829
  %v966 = vadd.f32 %v962, %v964
  %v967 = vadd.f32 %v963, %v965
  %v968 = vld [vmem:[%s3 + $0xa0] sm:$0xff]
  %v969 = vld [vmem:[%s3 + $0xa8] sm:$0xff]
  %v970 = vld [vmem:[%s3 + $0xb0] sm:$0xff]
  %v971 = vld [vmem:[%s3 + $0xb8] sm:$0xff]
  %974 = vrot.lane.b32.xlu0 %v966, 96
  %v975 = vpop.permute.xlu0 %974
  %976 = vrot.lane.b32.xlu0 %v967, 96
  %v977 = vpop.permute.xlu0 %976
  %v978 = vsel %vm167, %v975, 0
  %v980 = vsel %vm167, %v977, 0
  %982 = vmatpush.msra.mxu0 0.0
  %983 = vmatpush.msra.mxu0 0.0
  %984 = vmatpush.msra.mxu0 0.0
  %985 = vmatpush.msra.mxu0 0.0
  %986 = vmatpush.msra.mxu0 0.0
  %987 = vmatpush.msra.mxu0 0.0
  %988 = vmatpush.msra.mxu0 0.0
  %989 = vmatpush.msra.mxu0 0.0
  %990 = vmatpush.msra.mxu0 0.0
  %991 = vmatpush.msra.mxu0 0.0
  %992 = vmatpush.msra.mxu0 0.0
  %993 = vmatpush.msra.mxu0 0.0
  %994 = vmatpush.msra.mxu0 %v971
  %995 = vmatpush.msra.mxu0 %v970
  %996 = vmatpush.msra.mxu0 %v969
  %997 = vmatpush.msra.mxu0 %v968
  %998 = vmatmul.f32.gmra.mxu0 %v978
  %v999 = vpop.f32.mrf.mxu0
  %v1000 = vadd.f32 0.0, %v999
  %1001 = vmatmul.f32.gmra.mxu0 %v980
  %v1002 = vpop.f32.mrf.mxu0
  %1003 = vdwg.mxu0
  %v1004 = vadd.f32 %v866, %v1000
  %1005 = vmatpush.msra.mxu0 0.0
  %1006 = vmatpush.msra.mxu0 0.0
  %1007 = vmatpush.msra.mxu0 0.0
  %1008 = vmatpush.msra.mxu0 0.0
  %1009 = vmatpush.msra.mxu0 0.0
  %1010 = vmatpush.msra.mxu0 0.0
  %1011 = vmatpush.msra.mxu0 0.0
  %1012 = vmatpush.msra.mxu0 0.0
  %1013 = vmatpush.msra.mxu0 0.0
  %1014 = vmatpush.msra.mxu0 0.0
  %1015 = vmatpush.msra.mxu0 0.0
  %1016 = vmatpush.msra.mxu0 0.0
  %1017 = vmatpush.msra.mxu0 %v21
  %1018 = vmatpush.msra.mxu0 %v20
  %1019 = vmatpush.msra.mxu0 %v19
  %1020 = vmatpush.msra.mxu0 %v18
  %1021 = vmatmul.f32.gmra.mxu0 %v978
  %v1022 = vpop.f32.mrf.mxu0
  %v1023 = vadd.f32 %v24, %v1022
  %1024 = vmatmul.f32.gmra.mxu0 %v980
  %v1025 = vpop.f32.mrf.mxu0
  %v1026 = vadd.f32 %v24, %v1025
  %1027 = vdwg.mxu0
  %v1028 = vadd.f32 %v151, %v1023
  %v1029 = vadd.f32 %v154, %v1026
  %v1030 = vxor.u32 %v1028, 2147483648
  %v1031 = vxor.u32 %v1029, 2147483648
  %v1032 = vmul.f32 %v1030, 1.442695
  %v1033 = vpow.pop %v1032
  %v1034 = vmul.f32 %v1031, 1.442695
  %v1035 = vpow.pop %v1034
  %v1036 = vadd.f32 %v1033, 1.0
  %v1037 = vadd.f32 %v1035, 1.0
  %v1038 = vrcp.pop %v1036
  %v1039 = vmul.f32 %v1036, %v1038
  %v1040 = vsub.f32 1.0, %v1039
  %v1041 = vmul.f32 %v1038, %v1040
  %v1042 = vadd.f32 %v1038, %v1041
  %vm1043 = vweird.f32 %v1036
  %vm1044 = vweird.f32 %v1038
  %vm1045 = vmor %vm1043, %vm1044
  %v1046 = vsel %vm1045, %v1038, %v1042
  %v1047 = vand.u32 2147483647, %v1036
  %vm1048 = vcmp.eq.f32.partialorder %v1047, 8.507059e+37
  %v1049 = vand.u32 %v1036, 2147483648
  %v1050 = vor.u32 1.1754944e-38, %v1049
  %v1051 = vsel %vm1048, %v1050, %v1046
  %v1052 = vmul.f32 1.0, %v1051
  %v1053 = vrcp.pop %v1037
  %v1054 = vmul.f32 %v1037, %v1053
  %v1055 = vsub.f32 1.0, %v1054
  %v1056 = vmul.f32 %v1053, %v1055
  %v1057 = vadd.f32 %v1053, %v1056
  %vm1058 = vweird.f32 %v1037
  %vm1059 = vweird.f32 %v1053
  %vm1060 = vmor %vm1058, %vm1059
  %v1061 = vsel %vm1060, %v1053, %v1057
  %v1062 = vand.u32 2147483647, %v1037
  %vm1063 = vcmp.eq.f32.partialorder %v1062, 8.507059e+37
  %v1064 = vand.u32 %v1037, 2147483648
  %v1065 = vor.u32 1.1754944e-38, %v1064
  %v1066 = vsel %vm1063, %v1065, %v1061
  %v1067 = vmul.f32 1.0, %v1066
  %1070 = vrot.lane.b32.xlu0 %v1023, 64
  %v1071 = vpop.permute.xlu0 %1070
  %1072 = vrot.lane.b32.xlu0 %v1026, 64
  %v1073 = vpop.permute.xlu0 %1072
  %v1076 = vmul.f32 %v1052, %v1071
  %v1077 = vmul.f32 %v1067, %v1073
  %1080 = vrot.lane.b32.xlu0 %v1076, 64
  %v1081 = vpop.permute.xlu0 %1080
  %1082 = vrot.lane.b32.xlu0 %v1077, 64
  %v1083 = vpop.permute.xlu0 %1082
  %v1086 = vadd.f32 %v151, %v1081
  %v1087 = vadd.f32 %v154, %v1083
  %v1088 = vtanh.pop %v1086
  %v1089 = vtanh.pop %v1087
  %v1090 = vsub.f32 1.0, %v1052
  %v1091 = vsub.f32 1.0, %v1067
  %1094 = vrot.lane.b32.xlu0 %v1088, 96
  %v1095 = vpop.permute.xlu0 %1094
  %1096 = vrot.lane.b32.xlu0 %v1089, 96
  %v1097 = vpop.permute.xlu0 %1096
  %v1100 = vmul.f32 %v1090, %v1095
  %v1101 = vmul.f32 %v1091, %v1097
  %v1102 = vmul.f32 %v1052, %v966
  %v1103 = vmul.f32 %v1067, %v967
  %v1104 = vadd.f32 %v1100, %v1102
  %v1105 = vadd.f32 %v1101, %v1103
  %v1106 = vld [vmem:[%s3 + $0xc0] sm:$0xff]
  %v1107 = vld [vmem:[%s3 + $0xc8] sm:$0xff]
  %v1108 = vld [vmem:[%s3 + $0xd0] sm:$0xff]
  %v1109 = vld [vmem:[%s3 + $0xd8] sm:$0xff]
  %1112 = vrot.lane.b32.xlu0 %v1104, 96
  %v1113 = vpop.permute.xlu0 %1112
  %1114 = vrot.lane.b32.xlu0 %v1105, 96
  %v1115 = vpop.permute.xlu0 %1114
  %v1116 = vsel %vm167, %v1113, 0
  %v1118 = vsel %vm167, %v1115, 0
  %1120 = vmatpush.msra.mxu0 0.0
  %1121 = vmatpush.msra.mxu0 0.0
  %1122 = vmatpush.msra.mxu0 0.0
  %1123 = vmatpush.msra.mxu0 0.0
  %1124 = vmatpush.msra.mxu0 0.0
  %1125 = vmatpush.msra.mxu0 0.0
  %1126 = vmatpush.msra.mxu0 0.0
  %1127 = vmatpush.msra.mxu0 0.0
  %1128 = vmatpush.msra.mxu0 0.0
  %1129 = vmatpush.msra.mxu0 0.0
  %1130 = vmatpush.msra.mxu0 0.0
  %1131 = vmatpush.msra.mxu0 0.0
  %1132 = vmatpush.msra.mxu0 %v1109
  %1133 = vmatpush.msra.mxu0 %v1108
  %1134 = vmatpush.msra.mxu0 %v1107
  %1135 = vmatpush.msra.mxu0 %v1106
  %1136 = vmatmul.f32.gmra.mxu0 %v1116
  %v1137 = vpop.f32.mrf.mxu0
  %v1138 = vadd.f32 0.0, %v1137
  %1139 = vmatmul.f32.gmra.mxu0 %v1118
  %v1140 = vpop.f32.mrf.mxu0
  %1141 = vdwg.mxu0
  %v1142 = vadd.f32 %v1004, %v1138
  %1143 = vmatpush.msra.mxu0 0.0
  %1144 = vmatpush.msra.mxu0 0.0
  %1145 = vmatpush.msra.mxu0 0.0
  %1146 = vmatpush.msra.mxu0 0.0
  %1147 = vmatpush.msra.mxu0 0.0
  %1148 = vmatpush.msra.mxu0 0.0
  %1149 = vmatpush.msra.mxu0 0.0
  %1150 = vmatpush.msra.mxu0 0.0
  %1151 = vmatpush.msra.mxu0 0.0
  %1152 = vmatpush.msra.mxu0 0.0
  %1153 = vmatpush.msra.mxu0 0.0
  %1154 = vmatpush.msra.mxu0 0.0
  %1155 = vmatpush.msra.mxu0 %v21
  %1156 = vmatpush.msra.mxu0 %v20
  %1157 = vmatpush.msra.mxu0 %v19
  %1158 = vmatpush.msra.mxu0 %v18
  %1159 = vmatmul.f32.gmra.mxu0 %v1116
  %v1160 = vpop.f32.mrf.mxu0
  %v1161 = vadd.f32 %v24, %v1160
  %1162 = vmatmul.f32.gmra.mxu0 %v1118
  %v1163 = vpop.f32.mrf.mxu0
  %v1164 = vadd.f32 %v24, %v1163
  %1165 = vdwg.mxu0
  %v1166 = vadd.f32 %v157, %v1161
  %v1167 = vadd.f32 %v160, %v1164
  %v1168 = vxor.u32 %v1166, 2147483648
  %v1169 = vxor.u32 %v1167, 2147483648
  %v1170 = vmul.f32 %v1168, 1.442695
  %v1171 = vpow.pop %v1170
  %v1172 = vmul.f32 %v1169, 1.442695
  %v1173 = vpow.pop %v1172
  %v1174 = vadd.f32 %v1171, 1.0
  %v1175 = vadd.f32 %v1173, 1.0
  %v1176 = vrcp.pop %v1174
  %v1177 = vmul.f32 %v1174, %v1176
  %v1178 = vsub.f32 1.0, %v1177
  %v1179 = vmul.f32 %v1176, %v1178
  %v1180 = vadd.f32 %v1176, %v1179
  %vm1181 = vweird.f32 %v1174
  %vm1182 = vweird.f32 %v1176
  %vm1183 = vmor %vm1181, %vm1182
  %v1184 = vsel %vm1183, %v1176, %v1180
  %v1185 = vand.u32 2147483647, %v1174
  %vm1186 = vcmp.eq.f32.partialorder %v1185, 8.507059e+37
  %v1187 = vand.u32 %v1174, 2147483648
  %v1188 = vor.u32 1.1754944e-38, %v1187
  %v1189 = vsel %vm1186, %v1188, %v1184
  %v1190 = vmul.f32 1.0, %v1189
  %v1191 = vrcp.pop %v1175
  %v1192 = vmul.f32 %v1175, %v1191
  %v1193 = vsub.f32 1.0, %v1192
  %v1194 = vmul.f32 %v1191, %v1193
  %v1195 = vadd.f32 %v1191, %v1194
  %vm1196 = vweird.f32 %v1175
  %vm1197 = vweird.f32 %v1191
  %vm1198 = vmor %vm1196, %vm1197
  %v1199 = vsel %vm1198, %v1191, %v1195
  %v1200 = vand.u32 2147483647, %v1175
  %vm1201 = vcmp.eq.f32.partialorder %v1200, 8.507059e+37
  %v1202 = vand.u32 %v1175, 2147483648
  %v1203 = vor.u32 1.1754944e-38, %v1202
  %v1204 = vsel %vm1201, %v1203, %v1199
  %v1205 = vmul.f32 1.0, %v1204
  %1208 = vrot.lane.b32.xlu0 %v1161, 64
  %v1209 = vpop.permute.xlu0 %1208
  %1210 = vrot.lane.b32.xlu0 %v1164, 64
  %v1211 = vpop.permute.xlu0 %1210
  %v1214 = vmul.f32 %v1190, %v1209
  %v1215 = vmul.f32 %v1205, %v1211
  %1218 = vrot.lane.b32.xlu0 %v1214, 64
  %v1219 = vpop.permute.xlu0 %1218
  %1220 = vrot.lane.b32.xlu0 %v1215, 64
  %v1221 = vpop.permute.xlu0 %1220
  %v1224 = vadd.f32 %v157, %v1219
  %v1225 = vadd.f32 %v160, %v1221
  %v1226 = vtanh.pop %v1224
  %v1227 = vtanh.pop %v1225
  %v1228 = vsub.f32 1.0, %v1190
  %v1229 = vsub.f32 1.0, %v1205
  %1232 = vrot.lane.b32.xlu0 %v1226, 96
  %v1233 = vpop.permute.xlu0 %1232
  %1234 = vrot.lane.b32.xlu0 %v1227, 96
  %v1235 = vpop.permute.xlu0 %1234
  %v1238 = vmul.f32 %v1228, %v1233
  %v1239 = vmul.f32 %v1229, %v1235
  %v1240 = vmul.f32 %v1190, %v1104
  %v1241 = vmul.f32 %v1205, %v1105
  %v1242 = vadd.f32 %v1238, %v1240
  %v1243 = vadd.f32 %v1239, %v1241
  %v1244 = vld [vmem:[%s3 + $0xe0] sm:$0xff]
  %v1245 = vld [vmem:[%s3 + $0xe8] sm:$0xff]
  %v1246 = vld [vmem:[%s3 + $0xf0] sm:$0xff]
  %v1247 = vld [vmem:[%s3 + $0xf8] sm:$0xff]
  %1250 = vrot.lane.b32.xlu0 %v1242, 96
  %v1251 = vpop.permute.xlu0 %1250
  %1252 = vrot.lane.b32.xlu0 %v1243, 96
  %v1253 = vpop.permute.xlu0 %1252
  %v1254 = vsel %vm167, %v1251, 0
  %v1256 = vsel %vm167, %v1253, 0
  %1258 = vmatpush.msra.mxu0 0.0
  %1259 = vmatpush.msra.mxu0 0.0
  %1260 = vmatpush.msra.mxu0 0.0
  %1261 = vmatpush.msra.mxu0 0.0
  %1262 = vmatpush.msra.mxu0 0.0
  %1263 = vmatpush.msra.mxu0 0.0
  %1264 = vmatpush.msra.mxu0 0.0
  %1265 = vmatpush.msra.mxu0 0.0
  %1266 = vmatpush.msra.mxu0 0.0
  %1267 = vmatpush.msra.mxu0 0.0
  %1268 = vmatpush.msra.mxu0 0.0
  %1269 = vmatpush.msra.mxu0 0.0
  %1270 = vmatpush.msra.mxu0 %v1247
  %1271 = vmatpush.msra.mxu0 %v1246
  %1272 = vmatpush.msra.mxu0 %v1245
  %1273 = vmatpush.msra.mxu0 %v1244
  %1274 = vmatmul.f32.gmra.mxu0 %v1254
  %v1275 = vpop.f32.mrf.mxu0
  %v1276 = vadd.f32 0.0, %v1275
  %1277 = vmatmul.f32.gmra.mxu0 %v1256
  %v1278 = vpop.f32.mrf.mxu0
  %1279 = vdwg.mxu0
  %v1280 = vadd.f32 %v1142, %v1276
  %v1281 = vperm.slane %v29, 0
  %1282 = vmatpush.msra.mxu0 0.0
  %1283 = vmatpush.msra.mxu0 0.0
  %1284 = vmatpush.msra.mxu0 0.0
  %1285 = vmatpush.msra.mxu0 0.0
  %1286 = vmatpush.msra.mxu0 0.0
  %1287 = vmatpush.msra.mxu0 0.0
  %1288 = vmatpush.msra.mxu0 0.0
  %1289 = vmatpush.msra.mxu0 0.0
  %1290 = vmatpush.msra.mxu0 0.0
  %1291 = vmatpush.msra.mxu0 0.0
  %1292 = vmatpush.msra.mxu0 0.0
  %1293 = vmatpush.msra.mxu0 0.0
  %1294 = vmatpush.msra.mxu0 %v28
  %1295 = vmatpush.msra.mxu0 %v27
  %1296 = vmatpush.msra.mxu0 %v26
  %1297 = vmatpush.msra.mxu0 %v25
  %1298 = vmatmul.f32.gmra.mxu0 %v1254
  %v1299 = vpop.f32.mrf.mxu0
  %v1300 = vadd.f32 %v1281, %v1299
  %1301 = vmatmul.f32.gmra.mxu0 %v1256
  %v1302 = vpop.f32.mrf.mxu0
  %v1303 = vadd.f32 %v1281, %v1302
  %1304 = vdwg.mxu0
  %1309 = vrot.lane.b32.xlu0 %v25, 96
  %v1310 = vpop.permute.xlu0 %1309
  %1311 = vrot.lane.b32.xlu0 %v26, 96
  %v1312 = vpop.permute.xlu0 %1311
  %1313 = vrot.lane.b32.xlu0 %v27, 96
  %v1314 = vpop.permute.xlu0 %1313
  %1315 = vrot.lane.b32.xlu0 %v28, 96
  %v1316 = vpop.permute.xlu0 %1315
  %1322 = vrot.lane.b32.xlu0 %v1281, 96
  %v1323 = vpop.permute.xlu0 %1322
  %1325 = vmatpush.msra.mxu0 0.0
  %1326 = vmatpush.msra.mxu0 0.0
  %1327 = vmatpush.msra.mxu0 0.0
  %1328 = vmatpush.msra.mxu0 0.0
  %1329 = vmatpush.msra.mxu0 0.0
  %1330 = vmatpush.msra.mxu0 0.0
  %1331 = vmatpush.msra.mxu0 0.0
  %1332 = vmatpush.msra.mxu0 0.0
  %1333 = vmatpush.msra.mxu0 0.0
  %1334 = vmatpush.msra.mxu0 0.0
  %1335 = vmatpush.msra.mxu0 0.0
  %1336 = vmatpush.msra.mxu0 0.0
  %1337 = vmatpush.msra.mxu0 %v1316
  %1338 = vmatpush.msra.mxu0 %v1314
  %1339 = vmatpush.msra.mxu0 %v1312
  %1340 = vmatpush.msra.mxu0 %v1310
  %1341 = vmatmul.f32.gmra.mxu0 %v1254
  %v1342 = vpop.f32.mrf.mxu0
  %v1343 = vadd.f32 %v1323, %v1342
  %1344 = vmatmul.f32.gmra.mxu0 %v1256
  %v1345 = vpop.f32.mrf.mxu0
  %v1346 = vadd.f32 %v1323, %v1345
  %1347 = vdwg.mxu0
  %1350 = vst [vmem:[#allocation1] sm:$0xff] %v1300
  %s1351 = scalar_lea.vmem [#allocation1], 2
  %v1352 = vld [vmem:[%s1351] ss:$9 sm:$0xff]
  %s1353 = scalar_lea.vmem [#allocation1], 3
  %v1354 = vld [vmem:[%s1353] ss:$9 sm:$0xff]
  %s1355 = scalar_lea.vmem [#allocation1], 4
  %v1356 = vld [vmem:[%s1355] ss:$9 sm:$0xff]
  %s1357 = scalar_lea.vmem [#allocation1], 5
  %v1358 = vld [vmem:[%s1357] ss:$9 sm:$0xff]
  %s1359 = scalar_lea.vmem [#allocation1], 6
  %v1360 = vld [vmem:[%s1359] ss:$9 sm:$0xff]
  %s1361 = scalar_lea.vmem [#allocation1], 7
  %v1362 = vld [vmem:[%s1361] ss:$9 sm:$0xff]
  %1363 = vst [vmem:[#allocation1] sm:$0xff] %v1303
  %v1364 = vld [vmem:[#allocation1] ss:$9 sm:$0xff]
  %s1365 = scalar_lea.vmem [#allocation1], 1
  %v1366 = vld [vmem:[%s1365] ss:$9 sm:$0xff]
  %v1367 = vld [vmem:[%s1351] ss:$9 sm:$0xff]
  %v1368 = vld [vmem:[%s1353] ss:$9 sm:$0xff]
  %v1369 = vxor.u32 %v1343, 2147483648
  %v1370 = vxor.u32 %v1346, 2147483648
  %v1371 = vmul.f32 %v1369, 1.442695
  %v1372 = vpow.pop %v1371
  %v1373 = vmul.f32 %v1370, 1.442695
  %v1374 = vpow.pop %v1373
  %v1375 = vadd.f32 %v1372, 1.0
  %v1376 = vadd.f32 %v1374, 1.0
  %v1377 = vrcp.pop %v1375
  %v1378 = vmul.f32 %v1375, %v1377
  %v1379 = vsub.f32 1.0, %v1378
  %v1380 = vmul.f32 %v1377, %v1379
  %v1381 = vadd.f32 %v1377, %v1380
  %vm1382 = vweird.f32 %v1375
  %vm1383 = vweird.f32 %v1377
  %vm1384 = vmor %vm1382, %vm1383
  %v1385 = vsel %vm1384, %v1377, %v1381
  %v1386 = vand.u32 2147483647, %v1375
  %vm1387 = vcmp.eq.f32.partialorder %v1386, 8.507059e+37
  %v1388 = vand.u32 %v1375, 2147483648
  %v1389 = vor.u32 1.1754944e-38, %v1388
  %v1390 = vsel %vm1387, %v1389, %v1385
  %v1391 = vmul.f32 1.0, %v1390
  %v1392 = vrcp.pop %v1376
  %v1393 = vmul.f32 %v1376, %v1392
  %v1394 = vsub.f32 1.0, %v1393
  %v1395 = vmul.f32 %v1392, %v1394
  %v1396 = vadd.f32 %v1392, %v1395
  %vm1397 = vweird.f32 %v1376
  %vm1398 = vweird.f32 %v1392
  %vm1399 = vmor %vm1397, %vm1398
  %v1400 = vsel %vm1399, %v1392, %v1396
  %v1401 = vand.u32 2147483647, %v1376
  %vm1402 = vcmp.eq.f32.partialorder %v1401, 8.507059e+37
  %v1403 = vand.u32 %v1376, 2147483648
  %v1404 = vor.u32 1.1754944e-38, %v1403
  %v1405 = vsel %vm1402, %v1404, %v1400
  %v1406 = vmul.f32 1.0, %v1405
  %1409 = vst [vmem:[#allocation1] sm:$0xff] %v1391
  %s1410 = scalar_lea.vmem [#allocation1], 2
  %v1411 = vld [vmem:[%s1410] ss:$9 sm:$0xff]
  %s1412 = scalar_lea.vmem [#allocation1], 3
  %v1413 = vld [vmem:[%s1412] ss:$9 sm:$0xff]
  %s1414 = scalar_lea.vmem [#allocation1], 4
  %v1415 = vld [vmem:[%s1414] ss:$9 sm:$0xff]
  %s1416 = scalar_lea.vmem [#allocation1], 5
  %v1417 = vld [vmem:[%s1416] ss:$9 sm:$0xff]
  %s1418 = scalar_lea.vmem [#allocation1], 6
  %v1419 = vld [vmem:[%s1418] ss:$9 sm:$0xff]
  %s1420 = scalar_lea.vmem [#allocation1], 7
  %v1421 = vld [vmem:[%s1420] ss:$9 sm:$0xff]
  %1422 = vst [vmem:[#allocation1] sm:$0xff] %v1406
  %v1423 = vld [vmem:[#allocation1] ss:$9 sm:$0xff]
  %s1424 = scalar_lea.vmem [#allocation1], 1
  %v1425 = vld [vmem:[%s1424] ss:$9 sm:$0xff]
  %v1426 = vld [vmem:[%s1410] ss:$9 sm:$0xff]
  %v1427 = vld [vmem:[%s1412] ss:$9 sm:$0xff]
  %v1428 = vrot.slane %v1300, 1
  %1429 = vst [vmem:[#allocation1] ss:$9 sm:$0xff] %v1352
  %s1430 = scalar_lea.vmem [#allocation1], 1
  %1431 = vst [vmem:[%s1430] ss:$9 sm:$0xff] %v1354
  %s1432 = scalar_lea.vmem [#allocation1], 2
  %1433 = vst [vmem:[%s1432] ss:$9 sm:$0xff] %v1356
  %s1434 = scalar_lea.vmem [#allocation1], 3
  %1435 = vst [vmem:[%s1434] ss:$9 sm:$0xff] %v1358
  %s1436 = scalar_lea.vmem [#allocation1], 4
  %1437 = vst [vmem:[%s1436] ss:$9 sm:$0xff] %v1360
  %v1438 = vld [vmem:[#allocation1] sm:$0xff]
  %v1439 = vsel %vm167, %v1300, 0
  %v1441 = vsel %vm167, %v1438, 0
  %1443 = vmatpush.xpose.msra.mxu0 0.0
  %1444 = vmatpush.xpose.msra.mxu0 0.0
  %1445 = vmatpush.xpose.msra.mxu0 0.0
  %1446 = vmatpush.xpose.msra.mxu0 0.0
  %1447 = vmatpush.xpose.msra.mxu0 0.0
  %1448 = vmatpush.xpose.msra.mxu0 0.0
  %1449 = vmatpush.xpose.msra.mxu0 0.0
  %1450 = vmatpush.xpose.msra.mxu0 0.0
  %1451 = vmatpush.xpose.msra.mxu0 0.0
  %1452 = vmatpush.xpose.msra.mxu0 0.0
  %1453 = vmatpush.xpose.msra.mxu0 0.0
  %1454 = vmatpush.xpose.msra.mxu0 0.0
  %1455 = vmatpush.xpose.msra.mxu0 0.0
  %1456 = vmatpush.xpose.msra.mxu0 0.0
  %1457 = vmatpush.xpose.msra.mxu0 0.0
  %1458 = vmatpush.xpose.msra.mxu0 %v1441
  %1459 = vmatmul.f32.gmra.mxu0 %v1439
  %v1460 = vpop.f32.mrf.mxu0
  %v1461 = vadd.f32 0.0, %v1460
  %1462 = vdwg.mxu0
  %1463 = vst [vmem:[#allocation1] ss:$9 sm:$0xff] %v1362
  %s1464 = scalar_lea.vmem [#allocation1], 1
  %1465 = vst [vmem:[%s1464] ss:$9 sm:$0xff] %v1364
  %s1466 = scalar_lea.vmem [#allocation1], 2
  %1467 = vst [vmem:[%s1466] ss:$9 sm:$0xff] %v1366
  %s1468 = scalar_lea.vmem [#allocation1], 3
  %1469 = vst [vmem:[%s1468] ss:$9 sm:$0xff] %v1367
  %s1470 = scalar_lea.vmem [#allocation1], 4
  %1471 = vst [vmem:[%s1470] ss:$9 sm:$0xff] %v1368
  %v1472 = vld [vmem:[#allocation1] sm:$0xff]
  %v1473 = vsel %vm167, %v1428, 0
  %v1475 = vsel %vm167, %v1472, 0
  %1477 = vmatpush.xpose.msra.mxu0 0.0
  %1478 = vmatpush.xpose.msra.mxu0 0.0
  %1479 = vmatpush.xpose.msra.mxu0 0.0
  %1480 = vmatpush.xpose.msra.mxu0 0.0
  %1481 = vmatpush.xpose.msra.mxu0 0.0
  %1482 = vmatpush.xpose.msra.mxu0 0.0
  %1483 = vmatpush.xpose.msra.mxu0 0.0
  %1484 = vmatpush.xpose.msra.mxu0 0.0
  %1485 = vmatpush.xpose.msra.mxu0 0.0
  %1486 = vmatpush.xpose.msra.mxu0 0.0
  %1487 = vmatpush.xpose.msra.mxu0 0.0
  %1488 = vmatpush.xpose.msra.mxu0 0.0
  %1489 = vmatpush.xpose.msra.mxu0 0.0
  %1490 = vmatpush.xpose.msra.mxu0 0.0
  %1491 = vmatpush.xpose.msra.mxu0 0.0
  %1492 = vmatpush.xpose.msra.mxu0 %v1475
  %1493 = vmatmul.f32.gmra.mxu0 %v1473
  %v1494 = vpop.f32.mrf.mxu0
  %v1495 = vadd.f32 0.0, %v1494
  %1496 = vdwg.mxu0
  %vm1497 = vcmask 32768
  %v1498 = vsel %vm1497, %v1461, -inf
  %1499 = vmax.xlane.f32.xlu0 %v1498
  %v1500 = vpop.xlane.xlu0 %1499
  %v1501 = vsel %vm1497, %v1495, -inf
  %1502 = vmax.xlane.f32.xlu0 %v1501
  %v1503 = vpop.xlane.xlu0 %1502
  %v1504 = vsub.f32 %v1461, %v1500
  %v1505 = vsub.f32 %v1495, %v1503
  %v1506 = vmul.f32 %v1504, 1.442695
  %v1507 = vpow.pop %v1506
  %v1508 = vmul.f32 %v1505, 1.442695
  %v1509 = vpow.pop %v1508
  %v1510 = vsel %vm1497, %v1507, 0.0
  %1511 = vadd.xlane.f32.xlu0 %v1510
  %v1512 = vpop.xlane.xlu0 %1511
  %v1513 = vsel %vm1497, %v1509, 0.0
  %1514 = vadd.xlane.f32.xlu0 %v1513
  %v1515 = vpop.xlane.xlu0 %1514
  %v1516 = vrcp.pop %v1512
  %v1517 = vmul.f32 %v1512, %v1516
  %v1518 = vsub.f32 1.0, %v1517
  %v1519 = vmul.f32 %v1516, %v1518
  %v1520 = vadd.f32 %v1516, %v1519
  %vm1521 = vweird.f32 %v1512
  %vm1522 = vweird.f32 %v1516
  %vm1523 = vmor %vm1521, %vm1522
  %v1524 = vsel %vm1523, %v1516, %v1520
  %v1525 = vand.u32 2147483647, %v1512
  %vm1526 = vcmp.eq.f32.partialorder %v1525, 8.507059e+37
  %v1527 = vand.u32 %v1512, 2147483648
  %v1528 = vor.u32 1.1754944e-38, %v1527
  %v1529 = vsel %vm1526, %v1528, %v1524
  %v1530 = vmul.f32 %v1507, %v1529
  %v1531 = vrcp.pop %v1515
  %v1532 = vmul.f32 %v1515, %v1531
  %v1533 = vsub.f32 1.0, %v1532
  %v1534 = vmul.f32 %v1531, %v1533
  %v1535 = vadd.f32 %v1531, %v1534
  %vm1536 = vweird.f32 %v1515
  %vm1537 = vweird.f32 %v1531
  %vm1538 = vmor %vm1536, %vm1537
  %v1539 = vsel %vm1538, %v1531, %v1535
  %v1540 = vand.u32 2147483647, %v1515
  %vm1541 = vcmp.eq.f32.partialorder %v1540, 8.507059e+37
  %v1542 = vand.u32 %v1515, 2147483648
  %v1543 = vor.u32 1.1754944e-38, %v1542
  %v1544 = vsel %vm1541, %v1543, %v1539
  %v1545 = vmul.f32 %v1509, %v1544
  %v1546 = vld [vmem:[%s1] sm:$0x1f]
  %v1547 = vld [vmem:[%s1 + $0x8] sm:$0x1f]
  %vm1548 = vcmask 39936
  %v1550 = vsel %vm1548, %v1530, 0
  %vm1552 = vcmask 1044480
  %v1554 = vsel %vm1552, %v1546, 0
  %1556 = vmatpush.msra.mxu0 0.0
  %1557 = vmatpush.msra.mxu0 0.0
  %1558 = vmatpush.msra.mxu0 0.0
  %1559 = vmatpush.msra.mxu0 0.0
  %1560 = vmatpush.msra.mxu0 0.0
  %1561 = vmatpush.msra.mxu0 0.0
  %1562 = vmatpush.msra.mxu0 0.0
  %1563 = vmatpush.msra.mxu0 0.0
  %1564 = vmatpush.msra.mxu0 0.0
  %1565 = vmatpush.msra.mxu0 0.0
  %1566 = vmatpush.msra.mxu0 0.0
  %1567 = vmatpush.msra.mxu0 0.0
  %1568 = vmatpush.msra.mxu0 0.0
  %1569 = vmatpush.msra.mxu0 0.0
  %1570 = vmatpush.msra.mxu0 0.0
  %1571 = vmatpush.msra.mxu0 %v1554
  %1572 = vmatmul.f32.gmra.mxu0 %v1550
  %v1573 = vpop.f32.mrf.mxu0
  %v1574 = vadd.f32 0.0, %v1573
  %1575 = vdwg.mxu0
  %v1577 = vsel %vm1548, %v1545, 0
  %v1580 = vsel %vm1552, %v1547, 0
  %1582 = vmatpush.msra.mxu0 0.0
  %1583 = vmatpush.msra.mxu0 0.0
  %1584 = vmatpush.msra.mxu0 0.0
  %1585 = vmatpush.msra.mxu0 0.0
  %1586 = vmatpush.msra.mxu0 0.0
  %1587 = vmatpush.msra.mxu0 0.0
  %1588 = vmatpush.msra.mxu0 0.0
  %1589 = vmatpush.msra.mxu0 0.0
  %1590 = vmatpush.msra.mxu0 0.0
  %1591 = vmatpush.msra.mxu0 0.0
  %1592 = vmatpush.msra.mxu0 0.0
  %1593 = vmatpush.msra.mxu0 0.0
  %1594 = vmatpush.msra.mxu0 0.0
  %1595 = vmatpush.msra.mxu0 0.0
  %1596 = vmatpush.msra.mxu0 0.0
  %1597 = vmatpush.msra.mxu0 %v1580
  %1598 = vmatmul.f32.gmra.mxu0 %v1577
  %v1599 = vpop.f32.mrf.mxu0
  %v1600 = vadd.f32 0.0, %v1599
  %1601 = vdwg.mxu0
  %v1602 = vperm.slane %v30, 0
  %v1603 = vadd.f32 %v1280, %v1602
  %1605 = vrot.lane.b32.xlu0 %v1603, 124
  %v1606 = vpop.permute.xlu0 %1605
  %1607 = vrot.lane.b32.xlu0 %v1603, 120
  %v1608 = vpop.permute.xlu0 %1607
  %v1610 = vrot.slane %v1608, 4
  %vm1611 = vcmask 1047556
  %v1612 = vsel %vm1611, %v1610, %v1603
  %v1614 = vunpack.c.l.s4 1983009808
  %v1615 = vunpack.c.0.s8 %v1614
  %v1616 = vperm.slane %v1612, %v1615
  %v1618 = vrot.slane %v1606, 4
  %v1619 = vsel %vm1611, %v1618, %v1616
  %v1621 = vunpack.c.l.s4 1934713408
  %v1622 = vunpack.c.0.s8 %v1621
  %v1623 = vperm.slane %v1619, %v1622
  %v1624 = vrot.slane %v1623, 4
  %v1625 = vsel %vm1611, 0.0, %v1624
  %v1627 = vrot.slane %v1343, 1
  %v1628 = vperm.slane %v1343, 0
  %v1629 = vperm.slane %v1627, 0
  %1630 = vrot.lane.b32.xlu0 %v1628, 124
  %v1631 = vpop.permute.xlu0 %1630
  %1632 = vrot.lane.b32.xlu0 %v1629, 124
  %v1633 = vpop.permute.xlu0 %1632
  %v1636 = vadd.f32 %v1623, %v1631
  %v1637 = vadd.f32 %v1625, %v1633
  %vm1638 = vcmask 26624
  %1639 = vst.msk [vmem:[%s4] sm:$0x7] %vm1638, %v1636
  %1640 = vst.msk [vmem:[%s4 + $0x10] sm:$0x7] %vm1638, %v1637
  %vm1641 = vcmask 24576
  %1642 = vst.msk [vmem:[%s4 + $0x3] sm:$0x1] %vm1641, %v1574
  %1643 = vst.msk [vmem:[%s4 + $0x13] sm:$0x1] %vm1641, %v1600
  %1644 = vst [vmem:[#allocation1] ss:$9 sm:$0xff] %v1411
  %s1645 = scalar_lea.vmem [#allocation1], 1
  %1646 = vst [vmem:[%s1645] ss:$9 sm:$0xff] %v1413
  %s1647 = scalar_lea.vmem [#allocation1], 2
  %1648 = vst [vmem:[%s1647] ss:$9 sm:$0xff] %v1415
  %s1649 = scalar_lea.vmem [#allocation1], 3
  %1650 = vst [vmem:[%s1649] ss:$9 sm:$0xff] %v1417
  %s1651 = scalar_lea.vmem [#allocation1], 4
  %1652 = vst [vmem:[%s1651] ss:$9 sm:$0xff] %v1419
  %v1653 = vld [vmem:[#allocation1] sm:$0xff]
  %1654 = vst [vmem:[#allocation1] ss:$9 sm:$0xff] %v1421
  %1655 = vst [vmem:[%s1645] ss:$9 sm:$0xff] %v1423
  %1656 = vst [vmem:[%s1647] ss:$9 sm:$0xff] %v1425
  %1657 = vst [vmem:[%s1649] ss:$9 sm:$0xff] %v1426
  %1658 = vst [vmem:[%s1651] ss:$9 sm:$0xff] %v1427
  %v1659 = vld [vmem:[#allocation1] sm:$0xff]
  %vm1662 = vcmask 28672
  %1663 = vst.msk [vmem:[%s4 + $0x4] sm:$0x1f] %vm1662, %v1653
  %1664 = vst.msk [vmem:[%s4 + $0x14] sm:$0x1f] %vm1662, %v1659
  // Predicated region
  $region18: #{fudan_forward.1} parent=0 // pred_check
    _
  $region19: #{fudan_forward.1} parent=0 // pred_check_branch
    %1666 = sbr.rel (0) target = $region21
  $region20: #{fudan_forward.1} parent=0 // pred_region
    _
  $region21: #{fudan_forward.1} parent=0 // pred_fallthru
    _
  // Predicated region
  $region22: #{fudan_forward.1} parent=0 // pred_check
    _
  $region23: #{fudan_forward.1} parent=0 // pred_check_branch
    %1668 = sbr.rel (0) target = $region25
  $region24: #{fudan_forward.1} parent=0 // pred_region
    _
  $region25: #{fudan_forward.1} parent=0 // pred_fallthru
    _

</llo_original>
